<compile_context>
chip_gen: v7x
topology: tpu7x:2x2x1
jax: 0.10.0
libtpu: 0.0.40
codegen_flags: <defaults>
</compile_context>

<pallas_src>
import functools
import math

import jax
import jax.numpy as jnp
from jax.experimental import pallas as pl
from jax.experimental.pallas import tpu as pltpu

# Small, forward-consistent hyperparameters (module defaults would be 1024/8/2048).
D_MODEL = 32
NHEAD = 4
DIM_FF = 64
EPS = 1e-5


# ------------------------------ kernel helpers -------------------------------

def _layernorm(x, g, b):
    mu = jnp.mean(x, axis=-1, keepdims=True)
    xc = x - mu
    var = jnp.mean(xc * xc, axis=-1, keepdims=True)
    return xc * jax.lax.rsqrt(var + EPS) * g + b


# ------------------------------ fused kernel ---------------------------------

def decoder_kernel(tgt_ref, mem_ref,
                   wq_ref, wk_ref, wv_ref, bq_ref, bk_ref, bv_ref,
                   wo_ref, bo_ref,
                   w1_ref, b1_ref, w2_ref, b2_ref,
                   g1_ref, be1_ref, g2_ref, be2_ref, gf_ref, bef_ref,
                   o_ref, *, batch, lq, lk, nhead):
    D = tgt_ref.shape[-1]
    hd = D // nhead
    scale = 1.0 / math.sqrt(hd)

    tgt = tgt_ref[...].astype(jnp.float32)        # (B*Lq, D)
    mem = mem_ref[...].astype(jnp.float32)        # (B*Lk, D)

    # --- cross-attention projections: single 2-D matmuls over all rows -------
    q = jnp.dot(tgt, wq_ref[...], preferred_element_type=jnp.float32) + bq_ref[...]
    k = jnp.dot(mem, wk_ref[...], preferred_element_type=jnp.float32) + bk_ref[...]
    v = jnp.dot(mem, wv_ref[...], preferred_element_type=jnp.float32) + bv_ref[...]

    q3 = (q * scale).reshape(batch, lq, D)        # leading-dim split only
    k3 = k.reshape(batch, lk, D)
    v3 = v.reshape(batch, lk, D)

    # --- head-batched attention; head re-assembly fused into out-projection --
    attn = jnp.zeros((batch * lq, D), jnp.float32)
    for h in range(nhead):                         # static, tiny head count
        lo, hi = h * hd, (h + 1) * hd
        qh = q3[:, :, lo:hi]                       # (B, Lq, hd)
        kh = k3[:, :, lo:hi]                       # (B, Lk, hd)
        vh = v3[:, :, lo:hi]                       # (B, Lk, hd)
        s = jnp.einsum('bqd,bkd->bqk', qh, kh,
                       preferred_element_type=jnp.float32)        # (B, Lq, Lk)
        s = s - jnp.max(s, axis=-1, keepdims=True)
        p = jnp.exp(s)
        p = p * pl.reciprocal(jnp.sum(p, axis=-1, keepdims=True), approx=True)
        oh = jnp.einsum('bqk,bkd->bqd', p, vh,
                        preferred_element_type=jnp.float32)       # (B, Lq, hd)
        # attn @ Wo == sum_h attn_h @ Wo[h*hd:(h+1)*hd, :]
        attn = attn + jnp.dot(oh.reshape(batch * lq, hd), wo_ref[lo:hi, :],
                              preferred_element_type=jnp.float32)
    attn = attn + bo_ref[...]

    # --- residual + LayerNorm 1 ----------------------------------------------
    x = _layernorm(tgt + attn, g1_ref[...], be1_ref[...])

    # --- feed-forward + residual + LayerNorm 2 -------------------------------
    h1 = jnp.maximum(
        jnp.dot(x, w1_ref[...], preferred_element_type=jnp.float32) + b1_ref[...], 0.0)
    y = jnp.dot(h1, w2_ref[...], preferred_element_type=jnp.float32) + b2_ref[...]
    x = _layernorm(x + y, g2_ref[...], be2_ref[...])

    # --- final LayerNorm (Decoder.norm) ---------------------------------------
    o_ref[...] = _layernorm(x, gf_ref[...], bef_ref[...]).astype(o_ref.dtype)


# ------------------------------ pallas wrapper --------------------------------

def _spec(shape):
    return pl.BlockSpec(shape, lambda i: (0,) * len(shape))


def decoder_forward(params, tgt, memory):
    """tgt: (Lt, B, D), memory: (Lm, B, D) seq-first. Returns (Lt, B, D)."""
    Lt, B, D = tgt.shape
    Lm = memory.shape[0]
    p = params
    F = p["w1"].shape[1]

    # Fold (B, L) into one sublane-dense axis; layout plumbing done in XLA.
    tgt2d = jnp.transpose(tgt, (1, 0, 2)).reshape(B * Lt, D).astype(jnp.float32)
    mem2d = jnp.transpose(memory, (1, 0, 2)).reshape(B * Lm, D).astype(jnp.float32)

    kernel = functools.partial(decoder_kernel, batch=B, lq=Lt, lk=Lm, nhead=NHEAD)
    out2d = pl.pallas_call(
        kernel,
        out_shape=jax.ShapeDtypeStruct((B * Lt, D), jnp.float32),
        grid=(1,),
        in_specs=[
            _spec((B * Lt, D)), _spec((B * Lm, D)),
            _spec((D, D)), _spec((D, D)), _spec((D, D)),
            _spec((1, D)), _spec((1, D)), _spec((1, D)),
            _spec((D, D)), _spec((1, D)),
            _spec((D, F)), _spec((1, F)), _spec((F, D)), _spec((1, D)),
            _spec((1, D)), _spec((1, D)), _spec((1, D)), _spec((1, D)),
            _spec((1, D)), _spec((1, D)),
        ],
        out_specs=_spec((B * Lt, D)),
        compiler_params=pltpu.CompilerParams(dimension_semantics=("arbitrary",)),
    )(tgt2d, mem2d,
      p["wq"], p["wk"], p["wv"], p["bq"], p["bk"], p["bv"], p["wo"], p["bo"],
      p["w1"], p["b1"], p["w2"], p["b2"],
      p["g1"], p["be1"], p["g2"], p["be2"], p["gf"], p["bef"])

    return jnp.transpose(out2d.reshape(B, Lt, D), (1, 0, 2))


# ------------------------------ parameter init --------------------------------

def _xavier(key, shape):
    bound = math.sqrt(6.0 / (shape[0] + shape[1]))
    return jax.random.uniform(key, shape, jnp.float32, -bound, bound)


def init_params(key, d=D_MODEL, f=DIM_FF):
    ks = jax.random.split(key, 6)
    zd = jnp.zeros((1, d), jnp.float32)
    return {
        "wq": _xavier(ks[0], (d, d)), "wk": _xavier(ks[1], (d, d)),
        "wv": _xavier(ks[2], (d, d)), "wo": _xavier(ks[3], (d, d)),
        "bq": zd, "bk": zd, "bv": zd, "bo": zd,
        "w1": _xavier(ks[4], (d, f)), "b1": jnp.zeros((1, f), jnp.float32),
        "w2": _xavier(ks[5], (f, d)), "b2": zd,
        "g1": jnp.ones((1, d), jnp.float32), "be1": zd,
        "g2": jnp.ones((1, d), jnp.float32), "be2": zd,
        "gf": jnp.ones((1, d), jnp.float32), "bef": zd,
    }


# ------------------------------ pure-JAX reference ----------------------------

def decoder_reference(params, tgt, memory):
    p = params
    Lt, B, D = tgt.shape
    Lm = memory.shape[0]
    hd = D // NHEAD
    x = jnp.transpose(tgt, (1, 0, 2)).astype(jnp.float32)       # (B, Lt, D)
    m = jnp.transpose(memory, (1, 0, 2)).astype(jnp.float32)    # (B, Lm, D)
    q = x @ p["wq"] + p["bq"]
    k = m @ p["wk"] + p["bk"]
    v = m @ p["wv"] + p["bv"]
    q = q.reshape(B, Lt, NHEAD, hd).transpose(0, 2, 1, 3) / math.sqrt(hd)
    k = k.reshape(B, Lm, NHEAD, hd).transpose(0, 2, 1, 3)
    v = v.reshape(B, Lm, NHEAD, hd).transpose(0, 2, 1, 3)
    s = jnp.einsum('bhqd,bhkd->bhqk', q, k)
    w = jax.nn.softmax(s, axis=-1)
    o = jnp.einsum('bhqk,bhkd->bhqd', w, v).transpose(0, 2, 1, 3).reshape(B, Lt, D)
    attn = o @ p["wo"] + p["bo"]

    def ln(z, g, b):
        mu = z.mean(-1, keepdims=True)
        var = ((z - mu) ** 2).mean(-1, keepdims=True)
        return (z - mu) * jax.lax.rsqrt(var + EPS) * g + b

    x1 = ln(x + attn, p["g1"], p["be1"])
    h = jax.nn.relu(x1 @ p["w1"] + p["b1"])
    y = h @ p["w2"] + p["b2"]
    x2 = ln(x1 + y, p["g2"], p["be2"])
    out = ln(x2, p["gf"], p["bef"])
    return jnp.transpose(out, (1, 0, 2))


# ----------------------------------- main --------------------------------------

if __name__ == "__main__":
    key = jax.random.PRNGKey(0)
    kp, k1, k2 = jax.random.split(key, 3)

    Lt, Lm, B = 8, 8, 2
    params = init_params(kp)
    tgt = jax.random.normal(k1, (Lt, B, D_MODEL), jnp.float32)
    memory = jax.random.normal(k2, (Lm, B, D_MODEL), jnp.float32)

    out = decoder_forward(params, tgt, memory)
    out = jax.block_until_ready(out)

    assert out.shape == (Lt, B, D_MODEL)
    assert bool(jnp.all(jnp.isfinite(out)))

    ref = decoder_reference(params, tgt, memory)
    max_err = float(jnp.max(jnp.abs(out - ref)))
    # Loose tolerance: softmax denominator uses the EUP approximate reciprocal.
    assert max_err < 5e-2, f"max abs err vs reference: {max_err}"

    print("KERNEL_OK")
</pallas_src>

<mosaic_0001>
module attributes {stable_mosaic.version = 11 : i64} {
  func.func @decoder_kernel(%arg0: i32, %arg1: memref<16x32xf32, #tpu.memory_space<vmem>>, %arg2: memref<16x32xf32, #tpu.memory_space<vmem>>, %arg3: memref<32x32xf32, #tpu.memory_space<vmem>>, %arg4: memref<32x32xf32, #tpu.memory_space<vmem>>, %arg5: memref<32x32xf32, #tpu.memory_space<vmem>>, %arg6: memref<1x32xf32, #tpu.memory_space<vmem>>, %arg7: memref<1x32xf32, #tpu.memory_space<vmem>>, %arg8: memref<1x32xf32, #tpu.memory_space<vmem>>, %arg9: memref<32x32xf32, #tpu.memory_space<vmem>>, %arg10: memref<1x32xf32, #tpu.memory_space<vmem>>, %arg11: memref<32x64xf32, #tpu.memory_space<vmem>>, %arg12: memref<1x64xf32, #tpu.memory_space<vmem>>, %arg13: memref<64x32xf32, #tpu.memory_space<vmem>>, %arg14: memref<1x32xf32, #tpu.memory_space<vmem>>, %arg15: memref<1x32xf32, #tpu.memory_space<vmem>>, %arg16: memref<1x32xf32, #tpu.memory_space<vmem>>, %arg17: memref<1x32xf32, #tpu.memory_space<vmem>>, %arg18: memref<1x32xf32, #tpu.memory_space<vmem>>, %arg19: memref<1x32xf32, #tpu.memory_space<vmem>>, %arg20: memref<1x32xf32, #tpu.memory_space<vmem>>, %arg21: memref<16x32xf32, #tpu.memory_space<vmem>>) attributes {dimension_semantics = [#tpu.dimension_semantics<arbitrary>], iteration_bounds = array<i64: 1>, scalar_prefetch = 0 : i64, scratch_operands = 0 : i64, tpu.core_type = #tpu.core_type<tc>, window_params = [{pipeline_mode = #tpu.pipeline_mode<synchronous>, transform_indices = @transform_0, window_bounds = array<i64: 16, 32>}, {pipeline_mode = #tpu.pipeline_mode<synchronous>, transform_indices = @transform_1, window_bounds = array<i64: 16, 32>}, {pipeline_mode = #tpu.pipeline_mode<synchronous>, transform_indices = @transform_2, window_bounds = array<i64: 32, 32>}, {pipeline_mode = #tpu.pipeline_mode<synchronous>, transform_indices = @transform_3, window_bounds = array<i64: 32, 32>}, {pipeline_mode = #tpu.pipeline_mode<synchronous>, transform_indices = @transform_4, window_bounds = array<i64: 32, 32>}, {pipeline_mode = #tpu.pipeline_mode<synchronous>, transform_indices = @transform_5, window_bounds = array<i64: 1, 32>}, {pipeline_mode = #tpu.pipeline_mode<synchronous>, transform_indices = @transform_6, window_bounds = array<i64: 1, 32>}, {pipeline_mode = #tpu.pipeline_mode<synchronous>, transform_indices = @transform_7, window_bounds = array<i64: 1, 32>}, {pipeline_mode = #tpu.pipeline_mode<synchronous>, transform_indices = @transform_8, window_bounds = array<i64: 32, 32>}, {pipeline_mode = #tpu.pipeline_mode<synchronous>, transform_indices = @transform_9, window_bounds = array<i64: 1, 32>}, {pipeline_mode = #tpu.pipeline_mode<synchronous>, transform_indices = @transform_10, window_bounds = array<i64: 32, 64>}, {pipeline_mode = #tpu.pipeline_mode<synchronous>, transform_indices = @transform_11, window_bounds = array<i64: 1, 64>}, {pipeline_mode = #tpu.pipeline_mode<synchronous>, transform_indices = @transform_12, window_bounds = array<i64: 64, 32>}, {pipeline_mode = #tpu.pipeline_mode<synchronous>, transform_indices = @transform_13, window_bounds = array<i64: 1, 32>}, {pipeline_mode = #tpu.pipeline_mode<synchronous>, transform_indices = @transform_14, window_bounds = array<i64: 1, 32>}, {pipeline_mode = #tpu.pipeline_mode<synchronous>, transform_indices = @transform_15, window_bounds = array<i64: 1, 32>}, {pipeline_mode = #tpu.pipeline_mode<synchronous>, transform_indices = @transform_16, window_bounds = array<i64: 1, 32>}, {pipeline_mode = #tpu.pipeline_mode<synchronous>, transform_indices = @transform_17, window_bounds = array<i64: 1, 32>}, {pipeline_mode = #tpu.pipeline_mode<synchronous>, transform_indices = @transform_18, window_bounds = array<i64: 1, 32>}, {pipeline_mode = #tpu.pipeline_mode<synchronous>, transform_indices = @transform_19, window_bounds = array<i64: 1, 32>}, {pipeline_mode = #tpu.pipeline_mode<synchronous>, transform_indices = @transform_20, window_bounds = array<i64: 16, 32>}]} {
    %c0 = arith.constant 0 : index
    %c0_0 = arith.constant 0 : index
    %0 = vector.load %arg1[%c0, %c0_0] : memref<16x32xf32, #tpu.memory_space<vmem>>, vector<16x32xf32>
    %c0_1 = arith.constant 0 : index
    %c0_2 = arith.constant 0 : index
    %1 = vector.load %arg2[%c0_1, %c0_2] : memref<16x32xf32, #tpu.memory_space<vmem>>, vector<16x32xf32>
    %c0_3 = arith.constant 0 : index
    %c0_4 = arith.constant 0 : index
    %2 = vector.load %arg3[%c0_3, %c0_4] : memref<32x32xf32, #tpu.memory_space<vmem>>, vector<32x32xf32>
    %cst = arith.constant dense<0.000000e+00> : vector<16x32xf32>
    %3 = tpu.matmul %0, %2, %cst {dimension_numbers = #tpu.dot_dimension_numbers<[1], [0], [0], [1], [0, 0, 1, 1], [], []>} : vector<16x32xf32>, vector<32x32xf32>, vector<16x32xf32> -> vector<16x32xf32>
    %c0_5 = arith.constant 0 : index
    %c0_6 = arith.constant 0 : index
    %4 = vector.load %arg6[%c0_5, %c0_6] : memref<1x32xf32, #tpu.memory_space<vmem>>, vector<1x32xf32>
    %5 = vector.broadcast %4 : vector<1x32xf32> to vector<16x32xf32>
    %6 = arith.addf %3, %5 : vector<16x32xf32>
    %c0_7 = arith.constant 0 : index
    %c0_8 = arith.constant 0 : index
    %7 = vector.load %arg4[%c0_7, %c0_8] : memref<32x32xf32, #tpu.memory_space<vmem>>, vector<32x32xf32>
    %cst_9 = arith.constant dense<0.000000e+00> : vector<16x32xf32>
    %8 = tpu.matmul %1, %7, %cst_9 {dimension_numbers = #tpu.dot_dimension_numbers<[1], [0], [0], [1], [0, 0, 1, 1], [], []>} : vector<16x32xf32>, vector<32x32xf32>, vector<16x32xf32> -> vector<16x32xf32>
    %c0_10 = arith.constant 0 : index
    %c0_11 = arith.constant 0 : index
    %9 = vector.load %arg7[%c0_10, %c0_11] : memref<1x32xf32, #tpu.memory_space<vmem>>, vector<1x32xf32>
    %10 = vector.broadcast %9 : vector<1x32xf32> to vector<16x32xf32>
    %11 = arith.addf %8, %10 : vector<16x32xf32>
    %c0_12 = arith.constant 0 : index
    %c0_13 = arith.constant 0 : index
    %12 = vector.load %arg5[%c0_12, %c0_13] : memref<32x32xf32, #tpu.memory_space<vmem>>, vector<32x32xf32>
    %cst_14 = arith.constant dense<0.000000e+00> : vector<16x32xf32>
    %13 = tpu.matmul %1, %12, %cst_14 {dimension_numbers = #tpu.dot_dimension_numbers<[1], [0], [0], [1], [0, 0, 1, 1], [], []>} : vector<16x32xf32>, vector<32x32xf32>, vector<16x32xf32> -> vector<16x32xf32>
    %c0_15 = arith.constant 0 : index
    %c0_16 = arith.constant 0 : index
    %14 = vector.load %arg8[%c0_15, %c0_16] : memref<1x32xf32, #tpu.memory_space<vmem>>, vector<1x32xf32>
    %15 = vector.broadcast %14 : vector<1x32xf32> to vector<16x32xf32>
    %16 = arith.addf %13, %15 : vector<16x32xf32>
    %cst_17 = arith.constant 0.353553385 : f32
    %17 = vector.broadcast %cst_17 : f32 to vector<16x32xf32>
    %18 = arith.mulf %6, %17 : vector<16x32xf32>
    %19 = vector.shape_cast %18 : vector<16x32xf32> to vector<2x8x32xf32>
    %20 = vector.shape_cast %11 : vector<16x32xf32> to vector<2x8x32xf32>
    %21 = vector.shape_cast %16 : vector<16x32xf32> to vector<2x8x32xf32>
    %cst_18 = arith.constant 0.000000e+00 : f32
    %22 = vector.broadcast %cst_18 : f32 to vector<16x32xf32>
    %23 = vector.extract_strided_slice %19 {offsets = [0, 0, 0], sizes = [2, 8, 8], strides = [1, 1, 1]} : vector<2x8x32xf32> to vector<2x8x8xf32>
    %24 = vector.extract_strided_slice %20 {offsets = [0, 0, 0], sizes = [2, 8, 8], strides = [1, 1, 1]} : vector<2x8x32xf32> to vector<2x8x8xf32>
    %25 = vector.extract_strided_slice %21 {offsets = [0, 0, 0], sizes = [2, 8, 8], strides = [1, 1, 1]} : vector<2x8x32xf32> to vector<2x8x8xf32>
    "tpu.trace_start"() <{level = 10 : i32, message = "bqd,bkd->bqk"}> : () -> ()
    %cst_19 = arith.constant dense<0.000000e+00> : vector<2x8x8xf32>
    %26 = tpu.matmul %23, %24, %cst_19 {dimension_numbers = #tpu.dot_dimension_numbers<[2], [2], [1], [1], [0, 0, 0, 1, 1, 1], [0], [0]>} : vector<2x8x8xf32>, vector<2x8x8xf32>, vector<2x8x8xf32> -> vector<2x8x8xf32>
    "tpu.trace_stop"() : () -> ()
    %cst_20 = arith.constant dense<0xFF800000> : vector<2x8xf32>
    %27 = vector.multi_reduction <maximumf>, %26, %cst_20 [2] : vector<2x8x8xf32> to vector<2x8xf32>
    %28 = vector.shape_cast %27 : vector<2x8xf32> to vector<2x8x1xf32>
    %29 = vector.broadcast %28 : vector<2x8x1xf32> to vector<2x8x8xf32>
    %30 = arith.subf %26, %29 : vector<2x8x8xf32>
    %31 = math.exp %30 : vector<2x8x8xf32>
    %cst_21 = arith.constant dense<0.000000e+00> : vector<2x8xf32>
    %32 = vector.multi_reduction <add>, %31, %cst_21 [2] : vector<2x8x8xf32> to vector<2x8xf32>
    %33 = vector.shape_cast %32 : vector<2x8xf32> to vector<2x8x1xf32>
    %34 = tpu.reciprocal %33 {approx = true} : vector<2x8x1xf32> -> vector<2x8x1xf32>
    %35 = vector.broadcast %34 : vector<2x8x1xf32> to vector<2x8x8xf32>
    %36 = arith.mulf %31, %35 : vector<2x8x8xf32>
    "tpu.trace_start"() <{level = 10 : i32, message = "bqk,bkd->bqd"}> : () -> ()
    %cst_22 = arith.constant dense<0.000000e+00> : vector<2x8x8xf32>
    %37 = tpu.matmul %36, %25, %cst_22 {dimension_numbers = #tpu.dot_dimension_numbers<[2], [1], [1], [2], [0, 0, 0, 1, 1, 2], [0], [0]>} : vector<2x8x8xf32>, vector<2x8x8xf32>, vector<2x8x8xf32> -> vector<2x8x8xf32>
    "tpu.trace_stop"() : () -> ()
    %38 = vector.shape_cast %37 : vector<2x8x8xf32> to vector<16x8xf32>
    %c0_23 = arith.constant 0 : index
    %c0_24 = arith.constant 0 : index
    %39 = vector.load %arg9[%c0_23, %c0_24] : memref<32x32xf32, #tpu.memory_space<vmem>>, vector<8x32xf32>
    %cst_25 = arith.constant dense<0.000000e+00> : vector<16x32xf32>
    %40 = tpu.matmul %38, %39, %cst_25 {dimension_numbers = #tpu.dot_dimension_numbers<[1], [0], [0], [1], [0, 0, 1, 1], [], []>} : vector<16x8xf32>, vector<8x32xf32>, vector<16x32xf32> -> vector<16x32xf32>
    %41 = arith.addf %22, %40 : vector<16x32xf32>
    %42 = vector.extract_strided_slice %19 {offsets = [0, 0, 8], sizes = [2, 8, 8], strides = [1, 1, 1]} : vector<2x8x32xf32> to vector<2x8x8xf32>
    %43 = vector.extract_strided_slice %20 {offsets = [0, 0, 8], sizes = [2, 8, 8], strides = [1, 1, 1]} : vector<2x8x32xf32> to vector<2x8x8xf32>
    %44 = vector.extract_strided_slice %21 {offsets = [0, 0, 8], sizes = [2, 8, 8], strides = [1, 1, 1]} : vector<2x8x32xf32> to vector<2x8x8xf32>
    "tpu.trace_start"() <{level = 10 : i32, message = "bqd,bkd->bqk"}> : () -> ()
    %cst_26 = arith.constant dense<0.000000e+00> : vector<2x8x8xf32>
    %45 = tpu.matmul %42, %43, %cst_26 {dimension_numbers = #tpu.dot_dimension_numbers<[2], [2], [1], [1], [0, 0, 0, 1, 1, 1], [0], [0]>} : vector<2x8x8xf32>, vector<2x8x8xf32>, vector<2x8x8xf32> -> vector<2x8x8xf32>
    "tpu.trace_stop"() : () -> ()
    %cst_27 = arith.constant dense<0xFF800000> : vector<2x8xf32>
    %46 = vector.multi_reduction <maximumf>, %45, %cst_27 [2] : vector<2x8x8xf32> to vector<2x8xf32>
    %47 = vector.shape_cast %46 : vector<2x8xf32> to vector<2x8x1xf32>
    %48 = vector.broadcast %47 : vector<2x8x1xf32> to vector<2x8x8xf32>
    %49 = arith.subf %45, %48 : vector<2x8x8xf32>
    %50 = math.exp %49 : vector<2x8x8xf32>
    %cst_28 = arith.constant dense<0.000000e+00> : vector<2x8xf32>
    %51 = vector.multi_reduction <add>, %50, %cst_28 [2] : vector<2x8x8xf32> to vector<2x8xf32>
    %52 = vector.shape_cast %51 : vector<2x8xf32> to vector<2x8x1xf32>
    %53 = tpu.reciprocal %52 {approx = true} : vector<2x8x1xf32> -> vector<2x8x1xf32>
    %54 = vector.broadcast %53 : vector<2x8x1xf32> to vector<2x8x8xf32>
    %55 = arith.mulf %50, %54 : vector<2x8x8xf32>
    "tpu.trace_start"() <{level = 10 : i32, message = "bqk,bkd->bqd"}> : () -> ()
    %cst_29 = arith.constant dense<0.000000e+00> : vector<2x8x8xf32>
    %56 = tpu.matmul %55, %44, %cst_29 {dimension_numbers = #tpu.dot_dimension_numbers<[2], [1], [1], [2], [0, 0, 0, 1, 1, 2], [0], [0]>} : vector<2x8x8xf32>, vector<2x8x8xf32>, vector<2x8x8xf32> -> vector<2x8x8xf32>
    "tpu.trace_stop"() : () -> ()
    %57 = vector.shape_cast %56 : vector<2x8x8xf32> to vector<16x8xf32>
    %c8 = arith.constant 8 : index
    %c0_30 = arith.constant 0 : index
    %58 = vector.load %arg9[%c8, %c0_30] : memref<32x32xf32, #tpu.memory_space<vmem>>, vector<8x32xf32>
    %cst_31 = arith.constant dense<0.000000e+00> : vector<16x32xf32>
    %59 = tpu.matmul %57, %58, %cst_31 {dimension_numbers = #tpu.dot_dimension_numbers<[1], [0], [0], [1], [0, 0, 1, 1], [], []>} : vector<16x8xf32>, vector<8x32xf32>, vector<16x32xf32> -> vector<16x32xf32>
    %60 = arith.addf %41, %59 : vector<16x32xf32>
    %61 = vector.extract_strided_slice %19 {offsets = [0, 0, 16], sizes = [2, 8, 8], strides = [1, 1, 1]} : vector<2x8x32xf32> to vector<2x8x8xf32>
    %62 = vector.extract_strided_slice %20 {offsets = [0, 0, 16], sizes = [2, 8, 8], strides = [1, 1, 1]} : vector<2x8x32xf32> to vector<2x8x8xf32>
    %63 = vector.extract_strided_slice %21 {offsets = [0, 0, 16], sizes = [2, 8, 8], strides = [1, 1, 1]} : vector<2x8x32xf32> to vector<2x8x8xf32>
    "tpu.trace_start"() <{level = 10 : i32, message = "bqd,bkd->bqk"}> : () -> ()
    %cst_32 = arith.constant dense<0.000000e+00> : vector<2x8x8xf32>
    %64 = tpu.matmul %61, %62, %cst_32 {dimension_numbers = #tpu.dot_dimension_numbers<[2], [2], [1], [1], [0, 0, 0, 1, 1, 1], [0], [0]>} : vector<2x8x8xf32>, vector<2x8x8xf32>, vector<2x8x8xf32> -> vector<2x8x8xf32>
    "tpu.trace_stop"() : () -> ()
    %cst_33 = arith.constant dense<0xFF800000> : vector<2x8xf32>
    %65 = vector.multi_reduction <maximumf>, %64, %cst_33 [2] : vector<2x8x8xf32> to vector<2x8xf32>
    %66 = vector.shape_cast %65 : vector<2x8xf32> to vector<2x8x1xf32>
    %67 = vector.broadcast %66 : vector<2x8x1xf32> to vector<2x8x8xf32>
    %68 = arith.subf %64, %67 : vector<2x8x8xf32>
    %69 = math.exp %68 : vector<2x8x8xf32>
    %cst_34 = arith.constant dense<0.000000e+00> : vector<2x8xf32>
    %70 = vector.multi_reduction <add>, %69, %cst_34 [2] : vector<2x8x8xf32> to vector<2x8xf32>
    %71 = vector.shape_cast %70 : vector<2x8xf32> to vector<2x8x1xf32>
    %72 = tpu.reciprocal %71 {approx = true} : vector<2x8x1xf32> -> vector<2x8x1xf32>
    %73 = vector.broadcast %72 : vector<2x8x1xf32> to vector<2x8x8xf32>
    %74 = arith.mulf %69, %73 : vector<2x8x8xf32>
    "tpu.trace_start"() <{level = 10 : i32, message = "bqk,bkd->bqd"}> : () -> ()
    %cst_35 = arith.constant dense<0.000000e+00> : vector<2x8x8xf32>
    %75 = tpu.matmul %74, %63, %cst_35 {dimension_numbers = #tpu.dot_dimension_numbers<[2], [1], [1], [2], [0, 0, 0, 1, 1, 2], [0], [0]>} : vector<2x8x8xf32>, vector<2x8x8xf32>, vector<2x8x8xf32> -> vector<2x8x8xf32>
    "tpu.trace_stop"() : () -> ()
    %76 = vector.shape_cast %75 : vector<2x8x8xf32> to vector<16x8xf32>
    %c16 = arith.constant 16 : index
    %c0_36 = arith.constant 0 : index
    %77 = vector.load %arg9[%c16, %c0_36] : memref<32x32xf32, #tpu.memory_space<vmem>>, vector<8x32xf32>
    %cst_37 = arith.constant dense<0.000000e+00> : vector<16x32xf32>
    %78 = tpu.matmul %76, %77, %cst_37 {dimension_numbers = #tpu.dot_dimension_numbers<[1], [0], [0], [1], [0, 0, 1, 1], [], []>} : vector<16x8xf32>, vector<8x32xf32>, vector<16x32xf32> -> vector<16x32xf32>
    %79 = arith.addf %60, %78 : vector<16x32xf32>
    %80 = vector.extract_strided_slice %19 {offsets = [0, 0, 24], sizes = [2, 8, 8], strides = [1, 1, 1]} : vector<2x8x32xf32> to vector<2x8x8xf32>
    %81 = vector.extract_strided_slice %20 {offsets = [0, 0, 24], sizes = [2, 8, 8], strides = [1, 1, 1]} : vector<2x8x32xf32> to vector<2x8x8xf32>
    %82 = vector.extract_strided_slice %21 {offsets = [0, 0, 24], sizes = [2, 8, 8], strides = [1, 1, 1]} : vector<2x8x32xf32> to vector<2x8x8xf32>
    "tpu.trace_start"() <{level = 10 : i32, message = "bqd,bkd->bqk"}> : () -> ()
    %cst_38 = arith.constant dense<0.000000e+00> : vector<2x8x8xf32>
    %83 = tpu.matmul %80, %81, %cst_38 {dimension_numbers = #tpu.dot_dimension_numbers<[2], [2], [1], [1], [0, 0, 0, 1, 1, 1], [0], [0]>} : vector<2x8x8xf32>, vector<2x8x8xf32>, vector<2x8x8xf32> -> vector<2x8x8xf32>
    "tpu.trace_stop"() : () -> ()
    %cst_39 = arith.constant dense<0xFF800000> : vector<2x8xf32>
    %84 = vector.multi_reduction <maximumf>, %83, %cst_39 [2] : vector<2x8x8xf32> to vector<2x8xf32>
    %85 = vector.shape_cast %84 : vector<2x8xf32> to vector<2x8x1xf32>
    %86 = vector.broadcast %85 : vector<2x8x1xf32> to vector<2x8x8xf32>
    %87 = arith.subf %83, %86 : vector<2x8x8xf32>
    %88 = math.exp %87 : vector<2x8x8xf32>
    %cst_40 = arith.constant dense<0.000000e+00> : vector<2x8xf32>
    %89 = vector.multi_reduction <add>, %88, %cst_40 [2] : vector<2x8x8xf32> to vector<2x8xf32>
    %90 = vector.shape_cast %89 : vector<2x8xf32> to vector<2x8x1xf32>
    %91 = tpu.reciprocal %90 {approx = true} : vector<2x8x1xf32> -> vector<2x8x1xf32>
    %92 = vector.broadcast %91 : vector<2x8x1xf32> to vector<2x8x8xf32>
    %93 = arith.mulf %88, %92 : vector<2x8x8xf32>
    "tpu.trace_start"() <{level = 10 : i32, message = "bqk,bkd->bqd"}> : () -> ()
    %cst_41 = arith.constant dense<0.000000e+00> : vector<2x8x8xf32>
    %94 = tpu.matmul %93, %82, %cst_41 {dimension_numbers = #tpu.dot_dimension_numbers<[2], [1], [1], [2], [0, 0, 0, 1, 1, 2], [0], [0]>} : vector<2x8x8xf32>, vector<2x8x8xf32>, vector<2x8x8xf32> -> vector<2x8x8xf32>
    "tpu.trace_stop"() : () -> ()
    %95 = vector.shape_cast %94 : vector<2x8x8xf32> to vector<16x8xf32>
    %c24 = arith.constant 24 : index
    %c0_42 = arith.constant 0 : index
    %96 = vector.load %arg9[%c24, %c0_42] : memref<32x32xf32, #tpu.memory_space<vmem>>, vector<8x32xf32>
    %cst_43 = arith.constant dense<0.000000e+00> : vector<16x32xf32>
    %97 = tpu.matmul %95, %96, %cst_43 {dimension_numbers = #tpu.dot_dimension_numbers<[1], [0], [0], [1], [0, 0, 1, 1], [], []>} : vector<16x8xf32>, vector<8x32xf32>, vector<16x32xf32> -> vector<16x32xf32>
    %98 = arith.addf %79, %97 : vector<16x32xf32>
    %c0_44 = arith.constant 0 : index
    %c0_45 = arith.constant 0 : index
    %99 = vector.load %arg10[%c0_44, %c0_45] : memref<1x32xf32, #tpu.memory_space<vmem>>, vector<1x32xf32>
    %100 = vector.broadcast %99 : vector<1x32xf32> to vector<16x32xf32>
    %101 = arith.addf %98, %100 : vector<16x32xf32>
    %102 = arith.addf %0, %101 : vector<16x32xf32>
    %c0_46 = arith.constant 0 : index
    %c0_47 = arith.constant 0 : index
    %103 = vector.load %arg15[%c0_46, %c0_47] : memref<1x32xf32, #tpu.memory_space<vmem>>, vector<1x32xf32>
    %c0_48 = arith.constant 0 : index
    %c0_49 = arith.constant 0 : index
    %104 = vector.load %arg16[%c0_48, %c0_49] : memref<1x32xf32, #tpu.memory_space<vmem>>, vector<1x32xf32>
    %cst_50 = arith.constant dense<0.000000e+00> : vector<16xf32>
    %105 = vector.multi_reduction <add>, %102, %cst_50 [1] : vector<16x32xf32> to vector<16xf32>
    %106 = vector.shape_cast %105 : vector<16xf32> to vector<16x1xf32>
    %cst_51 = arith.constant 3.200000e+01 : f32
    %107 = vector.broadcast %cst_51 : f32 to vector<16x1xf32>
    %108 = arith.divf %106, %107 : vector<16x1xf32>
    %109 = vector.broadcast %108 : vector<16x1xf32> to vector<16x32xf32>
    %110 = arith.subf %102, %109 : vector<16x32xf32>
    %111 = arith.mulf %110, %110 : vector<16x32xf32>
    %cst_52 = arith.constant dense<0.000000e+00> : vector<16xf32>
    %112 = vector.multi_reduction <add>, %111, %cst_52 [1] : vector<16x32xf32> to vector<16xf32>
    %113 = vector.shape_cast %112 : vector<16xf32> to vector<16x1xf32>
    %cst_53 = arith.constant 3.200000e+01 : f32
    %114 = vector.broadcast %cst_53 : f32 to vector<16x1xf32>
    %115 = arith.divf %113, %114 : vector<16x1xf32>
    %cst_54 = arith.constant 9.99999974E-6 : f32
    %116 = vector.broadcast %cst_54 : f32 to vector<16x1xf32>
    %117 = arith.addf %115, %116 : vector<16x1xf32>
    %118 = math.rsqrt %117 : vector<16x1xf32>
    %119 = vector.broadcast %118 : vector<16x1xf32> to vector<16x32xf32>
    %120 = arith.mulf %110, %119 : vector<16x32xf32>
    %121 = vector.broadcast %103 : vector<1x32xf32> to vector<16x32xf32>
    %122 = arith.mulf %120, %121 : vector<16x32xf32>
    %123 = vector.broadcast %104 : vector<1x32xf32> to vector<16x32xf32>
    %124 = arith.addf %122, %123 : vector<16x32xf32>
    %c0_55 = arith.constant 0 : index
    %c0_56 = arith.constant 0 : index
    %125 = vector.load %arg11[%c0_55, %c0_56] : memref<32x64xf32, #tpu.memory_space<vmem>>, vector<32x64xf32>
    %cst_57 = arith.constant dense<0.000000e+00> : vector<16x64xf32>
    %126 = tpu.matmul %124, %125, %cst_57 {dimension_numbers = #tpu.dot_dimension_numbers<[1], [0], [0], [1], [0, 0, 1, 1], [], []>} : vector<16x32xf32>, vector<32x64xf32>, vector<16x64xf32> -> vector<16x64xf32>
    %c0_58 = arith.constant 0 : index
    %c0_59 = arith.constant 0 : index
    %127 = vector.load %arg12[%c0_58, %c0_59] : memref<1x64xf32, #tpu.memory_space<vmem>>, vector<1x64xf32>
    %128 = vector.broadcast %127 : vector<1x64xf32> to vector<16x64xf32>
    %129 = arith.addf %126, %128 : vector<16x64xf32>
    %cst_60 = arith.constant 0.000000e+00 : f32
    %130 = vector.broadcast %cst_60 : f32 to vector<16x64xf32>
    %131 = arith.maximumf %129, %130 : vector<16x64xf32>
    %c0_61 = arith.constant 0 : index
    %c0_62 = arith.constant 0 : index
    %132 = vector.load %arg13[%c0_61, %c0_62] : memref<64x32xf32, #tpu.memory_space<vmem>>, vector<64x32xf32>
    %cst_63 = arith.constant dense<0.000000e+00> : vector<16x32xf32>
    %133 = tpu.matmul %131, %132, %cst_63 {dimension_numbers = #tpu.dot_dimension_numbers<[1], [0], [0], [1], [0, 0, 1, 1], [], []>} : vector<16x64xf32>, vector<64x32xf32>, vector<16x32xf32> -> vector<16x32xf32>
    %c0_64 = arith.constant 0 : index
    %c0_65 = arith.constant 0 : index
    %134 = vector.load %arg14[%c0_64, %c0_65] : memref<1x32xf32, #tpu.memory_space<vmem>>, vector<1x32xf32>
    %135 = vector.broadcast %134 : vector<1x32xf32> to vector<16x32xf32>
    %136 = arith.addf %133, %135 : vector<16x32xf32>
    %137 = arith.addf %124, %136 : vector<16x32xf32>
    %c0_66 = arith.constant 0 : index
    %c0_67 = arith.constant 0 : index
    %138 = vector.load %arg17[%c0_66, %c0_67] : memref<1x32xf32, #tpu.memory_space<vmem>>, vector<1x32xf32>
    %c0_68 = arith.constant 0 : index
    %c0_69 = arith.constant 0 : index
    %139 = vector.load %arg18[%c0_68, %c0_69] : memref<1x32xf32, #tpu.memory_space<vmem>>, vector<1x32xf32>
    %cst_70 = arith.constant dense<0.000000e+00> : vector<16xf32>
    %140 = vector.multi_reduction <add>, %137, %cst_70 [1] : vector<16x32xf32> to vector<16xf32>
    %141 = vector.shape_cast %140 : vector<16xf32> to vector<16x1xf32>
    %cst_71 = arith.constant 3.200000e+01 : f32
    %142 = vector.broadcast %cst_71 : f32 to vector<16x1xf32>
    %143 = arith.divf %141, %142 : vector<16x1xf32>
    %144 = vector.broadcast %143 : vector<16x1xf32> to vector<16x32xf32>
    %145 = arith.subf %137, %144 : vector<16x32xf32>
    %146 = arith.mulf %145, %145 : vector<16x32xf32>
    %cst_72 = arith.constant dense<0.000000e+00> : vector<16xf32>
    %147 = vector.multi_reduction <add>, %146, %cst_72 [1] : vector<16x32xf32> to vector<16xf32>
    %148 = vector.shape_cast %147 : vector<16xf32> to vector<16x1xf32>
    %cst_73 = arith.constant 3.200000e+01 : f32
    %149 = vector.broadcast %cst_73 : f32 to vector<16x1xf32>
    %150 = arith.divf %148, %149 : vector<16x1xf32>
    %cst_74 = arith.constant 9.99999974E-6 : f32
    %151 = vector.broadcast %cst_74 : f32 to vector<16x1xf32>
    %152 = arith.addf %150, %151 : vector<16x1xf32>
    %153 = math.rsqrt %152 : vector<16x1xf32>
    %154 = vector.broadcast %153 : vector<16x1xf32> to vector<16x32xf32>
    %155 = arith.mulf %145, %154 : vector<16x32xf32>
    %156 = vector.broadcast %138 : vector<1x32xf32> to vector<16x32xf32>
    %157 = arith.mulf %155, %156 : vector<16x32xf32>
    %158 = vector.broadcast %139 : vector<1x32xf32> to vector<16x32xf32>
    %159 = arith.addf %157, %158 : vector<16x32xf32>
    %c0_75 = arith.constant 0 : index
    %c0_76 = arith.constant 0 : index
    %160 = vector.load %arg19[%c0_75, %c0_76] : memref<1x32xf32, #tpu.memory_space<vmem>>, vector<1x32xf32>
    %c0_77 = arith.constant 0 : index
    %c0_78 = arith.constant 0 : index
    %161 = vector.load %arg20[%c0_77, %c0_78] : memref<1x32xf32, #tpu.memory_space<vmem>>, vector<1x32xf32>
    %cst_79 = arith.constant dense<0.000000e+00> : vector<16xf32>
    %162 = vector.multi_reduction <add>, %159, %cst_79 [1] : vector<16x32xf32> to vector<16xf32>
    %163 = vector.shape_cast %162 : vector<16xf32> to vector<16x1xf32>
    %cst_80 = arith.constant 3.200000e+01 : f32
    %164 = vector.broadcast %cst_80 : f32 to vector<16x1xf32>
    %165 = arith.divf %163, %164 : vector<16x1xf32>
    %166 = vector.broadcast %165 : vector<16x1xf32> to vector<16x32xf32>
    %167 = arith.subf %159, %166 : vector<16x32xf32>
    %168 = arith.mulf %167, %167 : vector<16x32xf32>
    %cst_81 = arith.constant dense<0.000000e+00> : vector<16xf32>
    %169 = vector.multi_reduction <add>, %168, %cst_81 [1] : vector<16x32xf32> to vector<16xf32>
    %170 = vector.shape_cast %169 : vector<16xf32> to vector<16x1xf32>
    %cst_82 = arith.constant 3.200000e+01 : f32
    %171 = vector.broadcast %cst_82 : f32 to vector<16x1xf32>
    %172 = arith.divf %170, %171 : vector<16x1xf32>
    %cst_83 = arith.constant 9.99999974E-6 : f32
    %173 = vector.broadcast %cst_83 : f32 to vector<16x1xf32>
    %174 = arith.addf %172, %173 : vector<16x1xf32>
    %175 = math.rsqrt %174 : vector<16x1xf32>
    %176 = vector.broadcast %175 : vector<16x1xf32> to vector<16x32xf32>
    %177 = arith.mulf %167, %176 : vector<16x32xf32>
    %178 = vector.broadcast %160 : vector<1x32xf32> to vector<16x32xf32>
    %179 = arith.mulf %177, %178 : vector<16x32xf32>
    %180 = vector.broadcast %161 : vector<1x32xf32> to vector<16x32xf32>
    %181 = arith.addf %179, %180 : vector<16x32xf32>
    %c0_84 = arith.constant 0 : index
    %c0_85 = arith.constant 0 : index
    %182 = vector.load %arg21[%c0_84, %c0_85] : memref<16x32xf32, #tpu.memory_space<vmem>>, vector<16x32xf32>
    tpu.vector_store %arg21[%c0_84, %c0_85], %181 {strides = array<i32>} : memref<16x32xf32, #tpu.memory_space<vmem>>, vector<16x32xf32>,
    return
  }
  func.func @transform_0(%arg0: i32) -> (i32, i32) {
    %c0_i32 = arith.constant 0 : i32
    %c0_i32_0 = arith.constant 0 : i32
    %c0_i32_1 = arith.constant 0 : i32
    return %c0_i32, %c0_i32_0 : i32, i32
  }
  func.func @transform_1(%arg0: i32) -> (i32, i32) {
    %c0_i32 = arith.constant 0 : i32
    %c0_i32_0 = arith.constant 0 : i32
    %c0_i32_1 = arith.constant 0 : i32
    return %c0_i32, %c0_i32_0 : i32, i32
  }
  func.func @transform_2(%arg0: i32) -> (i32, i32) {
    %c0_i32 = arith.constant 0 : i32
    %c0_i32_0 = arith.constant 0 : i32
    %c0_i32_1 = arith.constant 0 : i32
    return %c0_i32, %c0_i32_0 : i32, i32
  }
  func.func @transform_3(%arg0: i32) -> (i32, i32) {
    %c0_i32 = arith.constant 0 : i32
    %c0_i32_0 = arith.constant 0 : i32
    %c0_i32_1 = arith.constant 0 : i32
    return %c0_i32, %c0_i32_0 : i32, i32
  }
  func.func @transform_4(%arg0: i32) -> (i32, i32) {
    %c0_i32 = arith.constant 0 : i32
    %c0_i32_0 = arith.constant 0 : i32
    %c0_i32_1 = arith.constant 0 : i32
    return %c0_i32, %c0_i32_0 : i32, i32
  }
  func.func @transform_5(%arg0: i32) -> (i32, i32) {
    %c0_i32 = arith.constant 0 : i32
    %c0_i32_0 = arith.constant 0 : i32
    %c0_i32_1 = arith.constant 0 : i32
    return %c0_i32, %c0_i32_0 : i32, i32
  }
  func.func @transform_6(%arg0: i32) -> (i32, i32) {
    %c0_i32 = arith.constant 0 : i32
    %c0_i32_0 = arith.constant 0 : i32
    %c0_i32_1 = arith.constant 0 : i32
    return %c0_i32, %c0_i32_0 : i32, i32
  }
  func.func @transform_7(%arg0: i32) -> (i32, i32) {
    %c0_i32 = arith.constant 0 : i32
    %c0_i32_0 = arith.constant 0 : i32
    %c0_i32_1 = arith.constant 0 : i32
    return %c0_i32, %c0_i32_0 : i32, i32
  }
  func.func @transform_8(%arg0: i32) -> (i32, i32) {
    %c0_i32 = arith.constant 0 : i32
    %c0_i32_0 = arith.constant 0 : i32
    %c0_i32_1 = arith.constant 0 : i32
    return %c0_i32, %c0_i32_0 : i32, i32
  }
  func.func @transform_9(%arg0: i32) -> (i32, i32) {
    %c0_i32 = arith.constant 0 : i32
    %c0_i32_0 = arith.constant 0 : i32
    %c0_i32_1 = arith.constant 0 : i32
    return %c0_i32, %c0_i32_0 : i32, i32
  }
  func.func @transform_10(%arg0: i32) -> (i32, i32) {
    %c0_i32 = arith.constant 0 : i32
    %c0_i32_0 = arith.constant 0 : i32
    %c0_i32_1 = arith.constant 0 : i32
    return %c0_i32, %c0_i32_0 : i32, i32
  }
  func.func @transform_11(%arg0: i32) -> (i32, i32) {
    %c0_i32 = arith.constant 0 : i32
    %c0_i32_0 = arith.constant 0 : i32
    %c0_i32_1 = arith.constant 0 : i32
    return %c0_i32, %c0_i32_0 : i32, i32
  }
  func.func @transform_12(%arg0: i32) -> (i32, i32) {
    %c0_i32 = arith.constant 0 : i32
    %c0_i32_0 = arith.constant 0 : i32
    %c0_i32_1 = arith.constant 0 : i32
    return %c0_i32, %c0_i32_0 : i32, i32
  }
  func.func @transform_13(%arg0: i32) -> (i32, i32) {
    %c0_i32 = arith.constant 0 : i32
    %c0_i32_0 = arith.constant 0 : i32
    %c0_i32_1 = arith.constant 0 : i32
    return %c0_i32, %c0_i32_0 : i32, i32
  }
  func.func @transform_14(%arg0: i32) -> (i32, i32) {
    %c0_i32 = arith.constant 0 : i32
    %c0_i32_0 = arith.constant 0 : i32
    %c0_i32_1 = arith.constant 0 : i32
    return %c0_i32, %c0_i32_0 : i32, i32
  }
  func.func @transform_15(%arg0: i32) -> (i32, i32) {
    %c0_i32 = arith.constant 0 : i32
    %c0_i32_0 = arith.constant 0 : i32
    %c0_i32_1 = arith.constant 0 : i32
    return %c0_i32, %c0_i32_0 : i32, i32
  }
  func.func @transform_16(%arg0: i32) -> (i32, i32) {
    %c0_i32 = arith.constant 0 : i32
    %c0_i32_0 = arith.constant 0 : i32
    %c0_i32_1 = arith.constant 0 : i32
    return %c0_i32, %c0_i32_0 : i32, i32
  }
  func.func @transform_17(%arg0: i32) -> (i32, i32) {
    %c0_i32 = arith.constant 0 : i32
    %c0_i32_0 = arith.constant 0 : i32
    %c0_i32_1 = arith.constant 0 : i32
    return %c0_i32, %c0_i32_0 : i32, i32
  }
  func.func @transform_18(%arg0: i32) -> (i32, i32) {
    %c0_i32 = arith.constant 0 : i32
    %c0_i32_0 = arith.constant 0 : i32
    %c0_i32_1 = arith.constant 0 : i32
    return %c0_i32, %c0_i32_0 : i32, i32
  }
  func.func @transform_19(%arg0: i32) -> (i32, i32) {
    %c0_i32 = arith.constant 0 : i32
    %c0_i32_0 = arith.constant 0 : i32
    %c0_i32_1 = arith.constant 0 : i32
    return %c0_i32, %c0_i32_0 : i32, i32
  }
  func.func @transform_20(%arg0: i32) -> (i32, i32) {
    %c0_i32 = arith.constant 0 : i32
    %c0_i32_0 = arith.constant 0 : i32
    %c0_i32_1 = arith.constant 0 : i32
    return %c0_i32, %c0_i32_0 : i32, i32
  }
}

</mosaic_0001>

<llo_original>
// kernel: tpu_custom_call.1
$region0: #{tpu_custom_call.1}
  #allocation0 [shape = 'u32[]', space=smem, size = 0x4, offset = 0x4, fixed_abs, tag = 'smem constant byte address 0x4 - core index']
  #allocation1 [shape = 'u32[144,128]{1,0:T(1,128)}', space=vmem, size = 0x12000, scoped, tag = 'internal scratch']
  %s0 = inlined_call_operand.hbm [shape: f32[16,32], index: 0, kind: input, shape index: {}]
  %s1 = inlined_call_operand.hbm [shape: f32[16,32], index: 1, kind: input, shape index: {}]
  %s2 = inlined_call_operand.vmem [shape: f32[32,32], index: 2, kind: input, shape index: {}]
  %s3 = inlined_call_operand.vmem [shape: f32[32,32], index: 3, kind: input, shape index: {}]
  %s4 = inlined_call_operand.vmem [shape: f32[32,32], index: 4, kind: input, shape index: {}]
  %s5 = inlined_call_operand.vmem [shape: f32[1,32], index: 5, kind: input, shape index: {}]
  %s6 = inlined_call_operand.vmem [shape: f32[1,32], index: 6, kind: input, shape index: {}]
  %s7 = inlined_call_operand.vmem [shape: f32[1,32], index: 7, kind: input, shape index: {}]
  %s8 = inlined_call_operand.hbm [shape: f32[32,32], index: 8, kind: input, shape index: {}]
  %s9 = inlined_call_operand.vmem [shape: f32[1,32], index: 9, kind: input, shape index: {}]
  %s10 = inlined_call_operand.hbm [shape: f32[32,64], index: 10, kind: input, shape index: {}]
  %s11 = inlined_call_operand.vmem [shape: f32[1,64], index: 11, kind: input, shape index: {}]
  %s12 = inlined_call_operand.vmem [shape: f32[64,32], index: 12, kind: input, shape index: {}]
  %s13 = inlined_call_operand.vmem [shape: f32[1,32], index: 13, kind: input, shape index: {}]
  %s14 = inlined_call_operand.vmem [shape: f32[1,32], index: 14, kind: input, shape index: {}]
  %s15 = inlined_call_operand.vmem [shape: f32[1,32], index: 15, kind: input, shape index: {}]
  %s16 = inlined_call_operand.vmem [shape: f32[1,32], index: 16, kind: input, shape index: {}]
  %s17 = inlined_call_operand.vmem [shape: f32[1,32], index: 17, kind: input, shape index: {}]
  %s18 = inlined_call_operand.vmem [shape: f32[1,32], index: 18, kind: input, shape index: {}]
  %s19 = inlined_call_operand.vmem [shape: f32[1,32], index: 19, kind: input, shape index: {}]
  %s20 = inlined_call_operand.hbm [shape: f32[16,32], index: 20, kind: output, shape index: {}]
  %s21 = sld [smem:[#allocation0]]
  $region106: #{tpu_custom_call.1} parent=0
    _
  %s23 = ssub.s32 1, %s21
  %s24 = scalar_select 0, %s23, %s21
  $region1: #{tpu_custom_call.1} parent=0
    #allocation2 [shape = 'u8[8192]{0}', space=vmem, size = 0x2000, scoped, tag = 'input window, operand 0, single buffered']
    #allocation3 [shape = 's32[1]{0}', space=sflag, size = 0x4, scoped, tag = 'scoped memory for tpu_custom_call.1']
    #allocation4 [shape = 's32[1]{0}', space=sflag, size = 0x4, scoped, tag = 'scoped memory for tpu_custom_call.1']
    #allocation5 [shape = 'u8[8192]{0}', space=vmem, size = 0x2000, scoped, tag = 'input window, operand 1, single buffered']
    #allocation6 [shape = 's32[1]{0}', space=sflag, size = 0x4, scoped, tag = 'scoped memory for tpu_custom_call.1']
    #allocation7 [shape = 'u8[16384]{0}', space=vmem, size = 0x4000, scoped, tag = 'input window, operand 8, single buffered']
    #allocation8 [shape = 'u8[16384]{0}', space=vmem, size = 0x4000, scoped, tag = 'input window, operand 10, single buffered']
    #allocation9 [shape = 's32[1]{0}', space=sflag, size = 0x4, scoped, tag = 'scoped memory for tpu_custom_call.1']
    #allocation10 [shape = 'u8[8192]{0}', space=vmem, size = 0x2000, scoped, tag = 'output window, operand 0, single buffered']
    %25 = vsyncpa [#allocation3], 0
    %26 = vsyncpa [#allocation6], 0
    %27 = vsyncpa [#allocation9], 0
    %28 = vsyncpa [#allocation4], 0
    // Predicated region
    $region2: #{tpu_custom_call.1} parent=1 // pred_check
      _
    $region3: #{tpu_custom_call.1} parent=1 // pred_check_branch
      %30 = sbr.rel (0) target = $region5
    $region4: #{tpu_custom_call.1} parent=1 // pred_region
      %s32 = ssub.s32 256, 256
      %33 = vsyncadd [#allocation3], %s32
      %s34 = sshll.u32 [#allocation2], 4
      %s35 = int_to_ptr.vmem [resolvable:$true] %s34
      %40 = dma.hbm_to_vmem [thread:$0]  %s0, 256, %s35, [#allocation3], 128, 128, 8
    $region5: #{tpu_custom_call.1} parent=1 // pred_fallthru
      _
    // Predicated region
    $region6: #{tpu_custom_call.1} parent=1 // pred_check
      _
    $region7: #{tpu_custom_call.1} parent=1 // pred_check_branch
      %42 = sbr.rel (0) target = $region9
    $region8: #{tpu_custom_call.1} parent=1 // pred_region
      %s44 = ssub.s32 256, 256
      %45 = vsyncadd [#allocation6], %s44
      %s46 = sshll.u32 [#allocation5], 4
      %s47 = int_to_ptr.vmem [resolvable:$true] %s46
      %52 = dma.hbm_to_vmem [thread:$0]  %s1, 256, %s47, [#allocation6], 128, 128, 8
    $region9: #{tpu_custom_call.1} parent=1 // pred_fallthru
      _
    // Predicated region
    $region10: #{tpu_custom_call.1} parent=1 // pred_check
      _
    $region11: #{tpu_custom_call.1} parent=1 // pred_check_branch
      %54 = sbr.rel (0) target = $region13
    $region12: #{tpu_custom_call.1} parent=1 // pred_region
      _
    $region13: #{tpu_custom_call.1} parent=1 // pred_fallthru
      _
    // Predicated region
    $region14: #{tpu_custom_call.1} parent=1 // pred_check
      _
    $region15: #{tpu_custom_call.1} parent=1 // pred_check_branch
      %56 = sbr.rel (0) target = $region17
    $region16: #{tpu_custom_call.1} parent=1 // pred_region
      _
    $region17: #{tpu_custom_call.1} parent=1 // pred_fallthru
      _
    // Predicated region
    $region18: #{tpu_custom_call.1} parent=1 // pred_check
      _
    $region19: #{tpu_custom_call.1} parent=1 // pred_check_branch
      %58 = sbr.rel (0) target = $region21
    $region20: #{tpu_custom_call.1} parent=1 // pred_region
      _
    $region21: #{tpu_custom_call.1} parent=1 // pred_fallthru
      _
    // Predicated region
    $region22: #{tpu_custom_call.1} parent=1 // pred_check
      _
    $region23: #{tpu_custom_call.1} parent=1 // pred_check_branch
      %60 = sbr.rel (0) target = $region25
    $region24: #{tpu_custom_call.1} parent=1 // pred_region
      _
    $region25: #{tpu_custom_call.1} parent=1 // pred_fallthru
      _
    // Predicated region
    $region26: #{tpu_custom_call.1} parent=1 // pred_check
      _
    $region27: #{tpu_custom_call.1} parent=1 // pred_check_branch
      %62 = sbr.rel (0) target = $region29
    $region28: #{tpu_custom_call.1} parent=1 // pred_region
      _
    $region29: #{tpu_custom_call.1} parent=1 // pred_fallthru
      _
    // Predicated region
    $region30: #{tpu_custom_call.1} parent=1 // pred_check
      _
    $region31: #{tpu_custom_call.1} parent=1 // pred_check_branch
      %64 = sbr.rel (0) target = $region33
    $region32: #{tpu_custom_call.1} parent=1 // pred_region
      _
    $region33: #{tpu_custom_call.1} parent=1 // pred_fallthru
      _
    // Predicated region
    $region34: #{tpu_custom_call.1} parent=1 // pred_check
      _
    $region35: #{tpu_custom_call.1} parent=1 // pred_check_branch
      %66 = sbr.rel (0) target = $region37
    $region36: #{tpu_custom_call.1} parent=1 // pred_region
      %s68 = ssub.s32 512, 512
      %69 = vsyncadd [#allocation6], %s68
      %s70 = sshll.u32 [#allocation7], 4
      %s71 = int_to_ptr.vmem [resolvable:$true] %s70
      %76 = dma.hbm_to_vmem [thread:$0]  %s8, 512, %s71, [#allocation6], 128, 128, 8
    $region37: #{tpu_custom_call.1} parent=1 // pred_fallthru
      _
    // Predicated region
    $region38: #{tpu_custom_call.1} parent=1 // pred_check
      _
    $region39: #{tpu_custom_call.1} parent=1 // pred_check_branch
      %78 = sbr.rel (0) target = $region41
    $region40: #{tpu_custom_call.1} parent=1 // pred_region
      _
    $region41: #{tpu_custom_call.1} parent=1 // pred_fallthru
      _
    // Predicated region
    $region42: #{tpu_custom_call.1} parent=1 // pred_check
      _
    $region43: #{tpu_custom_call.1} parent=1 // pred_check_branch
      %80 = sbr.rel (0) target = $region45
    $region44: #{tpu_custom_call.1} parent=1 // pred_region
      %s82 = ssub.s32 512, 512
      %83 = vsyncadd [#allocation9], %s82
      %s84 = sshll.u32 [#allocation8], 4
      %s85 = int_to_ptr.vmem [resolvable:$true] %s84
      %90 = dma.hbm_to_vmem [thread:$0]  %s10, 512, %s85, [#allocation9], 128, 128, 8
    $region45: #{tpu_custom_call.1} parent=1 // pred_fallthru
      _
    // Predicated region
    $region46: #{tpu_custom_call.1} parent=1 // pred_check
      _
    $region47: #{tpu_custom_call.1} parent=1 // pred_check_branch
      %92 = sbr.rel (0) target = $region49
    $region48: #{tpu_custom_call.1} parent=1 // pred_region
      _
    $region49: #{tpu_custom_call.1} parent=1 // pred_fallthru
      _
    // Predicated region
    $region50: #{tpu_custom_call.1} parent=1 // pred_check
      _
    $region51: #{tpu_custom_call.1} parent=1 // pred_check_branch
      %94 = sbr.rel (0) target = $region53
    $region52: #{tpu_custom_call.1} parent=1 // pred_region
      _
    $region53: #{tpu_custom_call.1} parent=1 // pred_fallthru
      _
    // Predicated region
    $region54: #{tpu_custom_call.1} parent=1 // pred_check
      _
    $region55: #{tpu_custom_call.1} parent=1 // pred_check_branch
      %96 = sbr.rel (0) target = $region57
    $region56: #{tpu_custom_call.1} parent=1 // pred_region
      _
    $region57: #{tpu_custom_call.1} parent=1 // pred_fallthru
      _
    // Predicated region
    $region58: #{tpu_custom_call.1} parent=1 // pred_check
      _
    $region59: #{tpu_custom_call.1} parent=1 // pred_check_branch
      %98 = sbr.rel (0) target = $region61
    $region60: #{tpu_custom_call.1} parent=1 // pred_region
      _
    $region61: #{tpu_custom_call.1} parent=1 // pred_fallthru
      _
    // Predicated region
    $region62: #{tpu_custom_call.1} parent=1 // pred_check
      _
    $region63: #{tpu_custom_call.1} parent=1 // pred_check_branch
      %100 = sbr.rel (0) target = $region65
    $region64: #{tpu_custom_call.1} parent=1 // pred_region
      _
    $region65: #{tpu_custom_call.1} parent=1 // pred_fallthru
      _
    // Predicated region
    $region66: #{tpu_custom_call.1} parent=1 // pred_check
      _
    $region67: #{tpu_custom_call.1} parent=1 // pred_check_branch
      %102 = sbr.rel (0) target = $region69
    $region68: #{tpu_custom_call.1} parent=1 // pred_region
      _
    $region69: #{tpu_custom_call.1} parent=1 // pred_fallthru
      _
    // Predicated region
    $region70: #{tpu_custom_call.1} parent=1 // pred_check
      _
    $region71: #{tpu_custom_call.1} parent=1 // pred_check_branch
      %104 = sbr.rel (0) target = $region73
    $region72: #{tpu_custom_call.1} parent=1 // pred_region
      _
    $region73: #{tpu_custom_call.1} parent=1 // pred_fallthru
      _
    // Predicated region
    $region74: #{tpu_custom_call.1} parent=1 // pred_check
      _
    $region75: #{tpu_custom_call.1} parent=1 // pred_check_branch
      %106 = sbr.rel (0) target = $region77
    $region76: #{tpu_custom_call.1} parent=1 // pred_region
      _
    $region77: #{tpu_custom_call.1} parent=1 // pred_fallthru
      _
    // Predicated region
    $region78: #{tpu_custom_call.1} parent=1 // pred_check
      _
    $region79: #{tpu_custom_call.1} parent=1 // pred_check_branch
      %108 = sbr.rel (0) target = $region81
    $region80: #{tpu_custom_call.1} parent=1 // pred_region
      _
    $region81: #{tpu_custom_call.1} parent=1 // pred_fallthru
      _
    // Predicated region
    $region82: #{tpu_custom_call.1} parent=1 // pred_check
      _
    $region83: #{tpu_custom_call.1} parent=1 // pred_check_branch
      %110 = sbr.rel (0) target = $region85
    $region84: #{tpu_custom_call.1} parent=1 // pred_region
      %111 = dma.done [#allocation3], 256
    $region85: #{tpu_custom_call.1} parent=1 // pred_fallthru
      _
    // Predicated region
    $region86: #{tpu_custom_call.1} parent=1 // pred_check
      _
    $region87: #{tpu_custom_call.1} parent=1 // pred_check_branch
      %113 = sbr.rel (0) target = $region89
    $region88: #{tpu_custom_call.1} parent=1 // pred_region
      %114 = dma.done [#allocation6], 256
    $region89: #{tpu_custom_call.1} parent=1 // pred_fallthru
      _
    // Predicated region
    $region90: #{tpu_custom_call.1} parent=1 // pred_check
      _
    $region91: #{tpu_custom_call.1} parent=1 // pred_check_branch
      %116 = sbr.rel (0) target = $region93
    $region92: #{tpu_custom_call.1} parent=1 // pred_region
      %117 = dma.done [#allocation6], 512
    $region93: #{tpu_custom_call.1} parent=1 // pred_fallthru
      _
    // Predicated region
    $region94: #{tpu_custom_call.1} parent=1 // pred_check
      _
    $region95: #{tpu_custom_call.1} parent=1 // pred_check_branch
      %119 = sbr.rel (0) target = $region97
    $region96: #{tpu_custom_call.1} parent=1 // pred_region
      %120 = dma.done [#allocation9], 512
    $region97: #{tpu_custom_call.1} parent=1 // pred_fallthru
      _
    %v121 = vld [vmem:[#allocation2] sm:$0xff]
    %v122 = vld [vmem:[#allocation2 + $0x8] sm:$0xff]
    %v123 = vld [vmem:[#allocation5] sm:$0xff]
    %v124 = vld [vmem:[#allocation5 + $0x8] sm:$0xff]
    %v125 = vld [vmem:[%s2] sm:$0xff]
    %v126 = vld [vmem:[%s2 + $0x8] sm:$0xff]
    %v127 = vld [vmem:[%s2 + $0x10] sm:$0xff]
    %v128 = vld [vmem:[%s2 + $0x18] sm:$0xff]
    %v129 = vld [vmem:[%s5] sm:$0x1]
    %v131 = vlaneseq
    %v132 = vshrl.u32 %v131, 7
    %v133 = vsub.s32 0, %v132
    %v134 = vrot.slane %v129, %v133
    %vm136 = vcmask 261120
    %v138 = vsel %vm136, %v121, 0
    %v141 = vsel %vm136, %v122, 0
    %143 = vmatprep.subr.mxu0 0.0
    %144 = vmatpush1.msra.mxu0 %v125
    %145 = vmatprep.subr.mxu0 0.0
    %146 = vmatpush1.msra.mxu0 %v126
    %147 = vmatprep.subr.mxu0 0.0
    %148 = vmatpush1.msra.mxu0 %v127
    %149 = vmatprep.subr.mxu0 0.0
    %150 = vmatpush1.msra.mxu0 %v128
    %151 = vmatprep.subr.mxu0 0.0
    %152 = vmatpush1.msra.mxu0 0.0
    %153 = vmatprep.subr.mxu0 0.0
    %154 = vmatpush1.msra.mxu0 0.0
    %155 = vmatprep.subr.mxu0 0.0
    %156 = vmatpush1.msra.mxu0 0.0
    %157 = vmatprep.subr.mxu0 0.0
    %158 = vmatpush1.msra.mxu0 0.0
    %159 = vmatprep.subr.mxu0 0.0
    %160 = vmatpush1.msra.mxu0 0.0
    %161 = vmatprep.subr.mxu0 0.0
    %162 = vmatpush1.msra.mxu0 0.0
    %163 = vmatprep.subr.mxu0 0.0
    %164 = vmatpush1.msra.mxu0 0.0
    %165 = vmatprep.subr.mxu0 0.0
    %166 = vmatpush1.msra.mxu0 0.0
    %167 = vmatprep.subr.mxu0 0.0
    %168 = vmatpush1.msra.mxu0 0.0
    %169 = vmatprep.subr.mxu0 0.0
    %170 = vmatpush1.msra.mxu0 0.0
    %171 = vmatprep.subr.mxu0 0.0
    %172 = vmatpush1.msra.mxu0 0.0
    %173 = vmatprep.subr.mxu0 0.0
    %174 = vmatpush1.msra.mxu0 0.0
    %175 = vmatprep.subr.mxu0 0.0
    %176 = vmatpush1.msra.mxu0 0.0
    %177 = vmatprep.subr.mxu0 0.0
    %178 = vmatpush1.msra.mxu0 0.0
    %179 = vmatprep.subr.mxu0 0.0
    %180 = vmatpush1.msra.mxu0 0.0
    %181 = vmatprep.subr.mxu0 0.0
    %182 = vmatpush1.msra.mxu0 0.0
    %183 = vmatprep.subr.mxu0 0.0
    %184 = vmatpush1.msra.mxu0 0.0
    %185 = vmatprep.subr.mxu0 0.0
    %186 = vmatpush1.msra.mxu0 0.0
    %187 = vmatprep.subr.mxu0 0.0
    %188 = vmatpush1.msra.mxu0 0.0
    %189 = vmatprep.subr.mxu0 0.0
    %190 = vmatpush1.msra.mxu0 0.0
    %191 = vmatprep.subr.mxu0 0.0
    %192 = vmatpush1.msra.mxu0 0.0
    %193 = vmatprep.subr.mxu0 0.0
    %194 = vmatpush1.msra.mxu0 0.0
    %195 = vmatprep.subr.mxu0 0.0
    %196 = vmatpush1.msra.mxu0 0.0
    %197 = vmatprep.subr.mxu0 0.0
    %198 = vmatpush1.msra.mxu0 0.0
    %199 = vmatprep.subr.mxu0 0.0
    %200 = vmatpush1.msra.mxu0 0.0
    %201 = vmatprep.subr.mxu0 0.0
    %202 = vmatpush1.msra.mxu0 0.0
    %203 = vmatprep.subr.mxu0 0.0
    %204 = vmatpush1.msra.mxu0 0.0
    %205 = vmatprep.subr.mxu0 0.0
    %206 = vmatpush1.msra.mxu0 0.0
    %207 = vmatprep.mubr.f32.mxu0 0.0
    %208 = vmatmul.mubr.f32.gmra.mrb[0].mxu0 %v138
    %v209 = vpop.f32.mrb[0].mxu0
    %v210 = vadd.f32 %v134, %v209
    %v211 = vpop.f32.mrb[0].mxu0
    %212 = vmatprep.mubr.f32.mxu0 0.0
    %213 = vmatmul.mubr.f32.gmra.mrb[0].mxu0 %v141
    %v214 = vpop.f32.mrb[0].mxu0
    %v215 = vadd.f32 %v134, %v214
    %v216 = vpop.f32.mrb[0].mxu0
    %217 = vdwg.mxu0
    %v218 = vld [vmem:[%s3] sm:$0xff]
    %v219 = vld [vmem:[%s3 + $0x8] sm:$0xff]
    %v220 = vld [vmem:[%s3 + $0x10] sm:$0xff]
    %v221 = vld [vmem:[%s3 + $0x18] sm:$0xff]
    %v222 = vld [vmem:[%s6] sm:$0x1]
    %v224 = vlaneseq
    %v225 = vshrl.u32 %v224, 7
    %v226 = vsub.s32 0, %v225
    %v227 = vrot.slane %v222, %v226
    %v230 = vsel %vm136, %v123, 0
    %v233 = vsel %vm136, %v124, 0
    %235 = vmatprep.subr.mxu0 0.0
    %236 = vmatpush1.msra.mxu0 %v218
    %237 = vmatprep.subr.mxu0 0.0
    %238 = vmatpush1.msra.mxu0 %v219
    %239 = vmatprep.subr.mxu0 0.0
    %240 = vmatpush1.msra.mxu0 %v220
    %241 = vmatprep.subr.mxu0 0.0
    %242 = vmatpush1.msra.mxu0 %v221
    %243 = vmatprep.subr.mxu0 0.0
    %244 = vmatpush1.msra.mxu0 0.0
    %245 = vmatprep.subr.mxu0 0.0
    %246 = vmatpush1.msra.mxu0 0.0
    %247 = vmatprep.subr.mxu0 0.0
    %248 = vmatpush1.msra.mxu0 0.0
    %249 = vmatprep.subr.mxu0 0.0
    %250 = vmatpush1.msra.mxu0 0.0
    %251 = vmatprep.subr.mxu0 0.0
    %252 = vmatpush1.msra.mxu0 0.0
    %253 = vmatprep.subr.mxu0 0.0
    %254 = vmatpush1.msra.mxu0 0.0
    %255 = vmatprep.subr.mxu0 0.0
    %256 = vmatpush1.msra.mxu0 0.0
    %257 = vmatprep.subr.mxu0 0.0
    %258 = vmatpush1.msra.mxu0 0.0
    %259 = vmatprep.subr.mxu0 0.0
    %260 = vmatpush1.msra.mxu0 0.0
    %261 = vmatprep.subr.mxu0 0.0
    %262 = vmatpush1.msra.mxu0 0.0
    %263 = vmatprep.subr.mxu0 0.0
    %264 = vmatpush1.msra.mxu0 0.0
    %265 = vmatprep.subr.mxu0 0.0
    %266 = vmatpush1.msra.mxu0 0.0
    %267 = vmatprep.subr.mxu0 0.0
    %268 = vmatpush1.msra.mxu0 0.0
    %269 = vmatprep.subr.mxu0 0.0
    %270 = vmatpush1.msra.mxu0 0.0
    %271 = vmatprep.subr.mxu0 0.0
    %272 = vmatpush1.msra.mxu0 0.0
    %273 = vmatprep.subr.mxu0 0.0
    %274 = vmatpush1.msra.mxu0 0.0
    %275 = vmatprep.subr.mxu0 0.0
    %276 = vmatpush1.msra.mxu0 0.0
    %277 = vmatprep.subr.mxu0 0.0
    %278 = vmatpush1.msra.mxu0 0.0
    %279 = vmatprep.subr.mxu0 0.0
    %280 = vmatpush1.msra.mxu0 0.0
    %281 = vmatprep.subr.mxu0 0.0
    %282 = vmatpush1.msra.mxu0 0.0
    %283 = vmatprep.subr.mxu0 0.0
    %284 = vmatpush1.msra.mxu0 0.0
    %285 = vmatprep.subr.mxu0 0.0
    %286 = vmatpush1.msra.mxu0 0.0
    %287 = vmatprep.subr.mxu0 0.0
    %288 = vmatpush1.msra.mxu0 0.0
    %289 = vmatprep.subr.mxu0 0.0
    %290 = vmatpush1.msra.mxu0 0.0
    %291 = vmatprep.subr.mxu0 0.0
    %292 = vmatpush1.msra.mxu0 0.0
    %293 = vmatprep.subr.mxu0 0.0
    %294 = vmatpush1.msra.mxu0 0.0
    %295 = vmatprep.subr.mxu0 0.0
    %296 = vmatpush1.msra.mxu0 0.0
    %297 = vmatprep.subr.mxu0 0.0
    %298 = vmatpush1.msra.mxu0 0.0
    %299 = vmatprep.mubr.f32.mxu0 0.0
    %300 = vmatmul.mubr.f32.gmra.mrb[0].mxu0 %v230
    %v301 = vpop.f32.mrb[0].mxu0
    %v302 = vadd.f32 %v227, %v301
    %v303 = vpop.f32.mrb[0].mxu0
    %304 = vmatprep.mubr.f32.mxu0 0.0
    %305 = vmatmul.mubr.f32.gmra.mrb[0].mxu0 %v233
    %v306 = vpop.f32.mrb[0].mxu0
    %v307 = vadd.f32 %v227, %v306
    %v308 = vpop.f32.mrb[0].mxu0
    %309 = vdwg.mxu0
    %v310 = vld [vmem:[%s4] sm:$0xff]
    %v311 = vld [vmem:[%s4 + $0x8] sm:$0xff]
    %v312 = vld [vmem:[%s4 + $0x10] sm:$0xff]
    %v313 = vld [vmem:[%s4 + $0x18] sm:$0xff]
    %v314 = vld [vmem:[%s7] sm:$0x1]
    %v316 = vlaneseq
    %v317 = vshrl.u32 %v316, 7
    %v318 = vsub.s32 0, %v317
    %v319 = vrot.slane %v314, %v318
    %321 = vmatprep.subr.mxu0 0.0
    %322 = vmatpush1.msra.mxu0 %v310
    %323 = vmatprep.subr.mxu0 0.0
    %324 = vmatpush1.msra.mxu0 %v311
    %325 = vmatprep.subr.mxu0 0.0
    %326 = vmatpush1.msra.mxu0 %v312
    %327 = vmatprep.subr.mxu0 0.0
    %328 = vmatpush1.msra.mxu0 %v313
    %329 = vmatprep.subr.mxu0 0.0
    %330 = vmatpush1.msra.mxu0 0.0
    %331 = vmatprep.subr.mxu0 0.0
    %332 = vmatpush1.msra.mxu0 0.0
    %333 = vmatprep.subr.mxu0 0.0
    %334 = vmatpush1.msra.mxu0 0.0
    %335 = vmatprep.subr.mxu0 0.0
    %336 = vmatpush1.msra.mxu0 0.0
    %337 = vmatprep.subr.mxu0 0.0
    %338 = vmatpush1.msra.mxu0 0.0
    %339 = vmatprep.subr.mxu0 0.0
    %340 = vmatpush1.msra.mxu0 0.0
    %341 = vmatprep.subr.mxu0 0.0
    %342 = vmatpush1.msra.mxu0 0.0
    %343 = vmatprep.subr.mxu0 0.0
    %344 = vmatpush1.msra.mxu0 0.0
    %345 = vmatprep.subr.mxu0 0.0
    %346 = vmatpush1.msra.mxu0 0.0
    %347 = vmatprep.subr.mxu0 0.0
    %348 = vmatpush1.msra.mxu0 0.0
    %349 = vmatprep.subr.mxu0 0.0
    %350 = vmatpush1.msra.mxu0 0.0
    %351 = vmatprep.subr.mxu0 0.0
    %352 = vmatpush1.msra.mxu0 0.0
    %353 = vmatprep.subr.mxu0 0.0
    %354 = vmatpush1.msra.mxu0 0.0
    %355 = vmatprep.subr.mxu0 0.0
    %356 = vmatpush1.msra.mxu0 0.0
    %357 = vmatprep.subr.mxu0 0.0
    %358 = vmatpush1.msra.mxu0 0.0
    %359 = vmatprep.subr.mxu0 0.0
    %360 = vmatpush1.msra.mxu0 0.0
    %361 = vmatprep.subr.mxu0 0.0
    %362 = vmatpush1.msra.mxu0 0.0
    %363 = vmatprep.subr.mxu0 0.0
    %364 = vmatpush1.msra.mxu0 0.0
    %365 = vmatprep.subr.mxu0 0.0
    %366 = vmatpush1.msra.mxu0 0.0
    %367 = vmatprep.subr.mxu0 0.0
    %368 = vmatpush1.msra.mxu0 0.0
    %369 = vmatprep.subr.mxu0 0.0
    %370 = vmatpush1.msra.mxu0 0.0
    %371 = vmatprep.subr.mxu0 0.0
    %372 = vmatpush1.msra.mxu0 0.0
    %373 = vmatprep.subr.mxu0 0.0
    %374 = vmatpush1.msra.mxu0 0.0
    %375 = vmatprep.subr.mxu0 0.0
    %376 = vmatpush1.msra.mxu0 0.0
    %377 = vmatprep.subr.mxu0 0.0
    %378 = vmatpush1.msra.mxu0 0.0
    %379 = vmatprep.subr.mxu0 0.0
    %380 = vmatpush1.msra.mxu0 0.0
    %381 = vmatprep.subr.mxu0 0.0
    %382 = vmatpush1.msra.mxu0 0.0
    %383 = vmatprep.subr.mxu0 0.0
    %384 = vmatpush1.msra.mxu0 0.0
    %385 = vmatprep.mubr.f32.mxu0 0.0
    %386 = vmatmul.mubr.f32.gmra.mrb[0].mxu0 %v230
    %v387 = vpop.f32.mrb[0].mxu0
    %v388 = vadd.f32 %v319, %v387
    %v389 = vpop.f32.mrb[0].mxu0
    %390 = vmatprep.mubr.f32.mxu0 0.0
    %391 = vmatmul.mubr.f32.gmra.mrb[0].mxu0 %v233
    %v392 = vpop.f32.mrb[0].mxu0
    %v393 = vadd.f32 %v319, %v392
    %v394 = vpop.f32.mrb[0].mxu0
    %395 = vdwg.mxu0
    %v396 = vmul.f32 %v210, 0.35355338
    %v397 = vmul.f32 %v215, 0.35355338
    %vm398 = vcmask 64512
    %v400 = vsel %vm398, %v396, 0
    %v403 = vsel %vm398, %v302, 0
    %405 = vmatprep.subr.mxu0 0.0
    %406 = vmatpush1.xpose.msra.mxu0 %v403
    %407 = vmatprep.subr.mxu0 0.0
    %408 = vmatpush1.xpose.msra.mxu0 0.0
    %409 = vmatprep.subr.mxu0 0.0
    %410 = vmatpush1.xpose.msra.mxu0 0.0
    %411 = vmatprep.subr.mxu0 0.0
    %412 = vmatpush1.xpose.msra.mxu0 0.0
    %413 = vmatprep.subr.mxu0 0.0
    %414 = vmatpush1.xpose.msra.mxu0 0.0
    %415 = vmatprep.subr.mxu0 0.0
    %416 = vmatpush1.xpose.msra.mxu0 0.0
    %417 = vmatprep.subr.mxu0 0.0
    %418 = vmatpush1.xpose.msra.mxu0 0.0
    %419 = vmatprep.subr.mxu0 0.0
    %420 = vmatpush1.xpose.msra.mxu0 0.0
    %421 = vmatprep.subr.mxu0 0.0
    %422 = vmatpush1.xpose.msra.mxu0 0.0
    %423 = vmatprep.subr.mxu0 0.0
    %424 = vmatpush1.xpose.msra.mxu0 0.0
    %425 = vmatprep.subr.mxu0 0.0
    %426 = vmatpush1.xpose.msra.mxu0 0.0
    %427 = vmatprep.subr.mxu0 0.0
    %428 = vmatpush1.xpose.msra.mxu0 0.0
    %429 = vmatprep.subr.mxu0 0.0
    %430 = vmatpush1.xpose.msra.mxu0 0.0
    %431 = vmatprep.subr.mxu0 0.0
    %432 = vmatpush1.xpose.msra.mxu0 0.0
    %433 = vmatprep.subr.mxu0 0.0
    %434 = vmatpush1.xpose.msra.mxu0 0.0
    %435 = vmatprep.subr.mxu0 0.0
    %436 = vmatpush1.xpose.msra.mxu0 0.0
    %437 = vmatprep.subr.mxu0 0.0
    %438 = vmatpush1.xpose.msra.mxu0 0.0
    %439 = vmatprep.subr.mxu0 0.0
    %440 = vmatpush1.xpose.msra.mxu0 0.0
    %441 = vmatprep.subr.mxu0 0.0
    %442 = vmatpush1.xpose.msra.mxu0 0.0
    %443 = vmatprep.subr.mxu0 0.0
    %444 = vmatpush1.xpose.msra.mxu0 0.0
    %445 = vmatprep.subr.mxu0 0.0
    %446 = vmatpush1.xpose.msra.mxu0 0.0
    %447 = vmatprep.subr.mxu0 0.0
    %448 = vmatpush1.xpose.msra.mxu0 0.0
    %449 = vmatprep.subr.mxu0 0.0
    %450 = vmatpush1.xpose.msra.mxu0 0.0
    %451 = vmatprep.subr.mxu0 0.0
    %452 = vmatpush1.xpose.msra.mxu0 0.0
    %453 = vmatprep.subr.mxu0 0.0
    %454 = vmatpush1.xpose.msra.mxu0 0.0
    %455 = vmatprep.subr.mxu0 0.0
    %456 = vmatpush1.xpose.msra.mxu0 0.0
    %457 = vmatprep.subr.mxu0 0.0
    %458 = vmatpush1.xpose.msra.mxu0 0.0
    %459 = vmatprep.subr.mxu0 0.0
    %460 = vmatpush1.xpose.msra.mxu0 0.0
    %461 = vmatprep.subr.mxu0 0.0
    %462 = vmatpush1.xpose.msra.mxu0 0.0
    %463 = vmatprep.subr.mxu0 0.0
    %464 = vmatpush1.xpose.msra.mxu0 0.0
    %465 = vmatprep.subr.mxu0 0.0
    %466 = vmatpush1.xpose.msra.mxu0 0.0
    %467 = vmatprep.subr.mxu0 0.0
    %468 = vmatpush1.xpose.msra.mxu0 0.0
    %469 = vmatprep.mubr.f32.mxu0 0.0
    %470 = vmatmul.mubr.f32.gmra.mrb[0].mxu0 %v400
    %v471 = vpop.f32.mrb[0].mxu0
    %v472 = vadd.f32 0.0, %v471
    %v473 = vpop.f32.mrb[0].mxu0
    %474 = vdwg.mxu0
    %v476 = vsel %vm398, %v397, 0
    %v479 = vsel %vm398, %v307, 0
    %481 = vmatprep.subr.mxu0 0.0
    %482 = vmatpush1.xpose.msra.mxu0 %v479
    %483 = vmatprep.subr.mxu0 0.0
    %484 = vmatpush1.xpose.msra.mxu0 0.0
    %485 = vmatprep.subr.mxu0 0.0
    %486 = vmatpush1.xpose.msra.mxu0 0.0
    %487 = vmatprep.subr.mxu0 0.0
    %488 = vmatpush1.xpose.msra.mxu0 0.0
    %489 = vmatprep.subr.mxu0 0.0
    %490 = vmatpush1.xpose.msra.mxu0 0.0
    %491 = vmatprep.subr.mxu0 0.0
    %492 = vmatpush1.xpose.msra.mxu0 0.0
    %493 = vmatprep.subr.mxu0 0.0
    %494 = vmatpush1.xpose.msra.mxu0 0.0
    %495 = vmatprep.subr.mxu0 0.0
    %496 = vmatpush1.xpose.msra.mxu0 0.0
    %497 = vmatprep.subr.mxu0 0.0
    %498 = vmatpush1.xpose.msra.mxu0 0.0
    %499 = vmatprep.subr.mxu0 0.0
    %500 = vmatpush1.xpose.msra.mxu0 0.0
    %501 = vmatprep.subr.mxu0 0.0
    %502 = vmatpush1.xpose.msra.mxu0 0.0
    %503 = vmatprep.subr.mxu0 0.0
    %504 = vmatpush1.xpose.msra.mxu0 0.0
    %505 = vmatprep.subr.mxu0 0.0
    %506 = vmatpush1.xpose.msra.mxu0 0.0
    %507 = vmatprep.subr.mxu0 0.0
    %508 = vmatpush1.xpose.msra.mxu0 0.0
    %509 = vmatprep.subr.mxu0 0.0
    %510 = vmatpush1.xpose.msra.mxu0 0.0
    %511 = vmatprep.subr.mxu0 0.0
    %512 = vmatpush1.xpose.msra.mxu0 0.0
    %513 = vmatprep.subr.mxu0 0.0
    %514 = vmatpush1.xpose.msra.mxu0 0.0
    %515 = vmatprep.subr.mxu0 0.0
    %516 = vmatpush1.xpose.msra.mxu0 0.0
    %517 = vmatprep.subr.mxu0 0.0
    %518 = vmatpush1.xpose.msra.mxu0 0.0
    %519 = vmatprep.subr.mxu0 0.0
    %520 = vmatpush1.xpose.msra.mxu0 0.0
    %521 = vmatprep.subr.mxu0 0.0
    %522 = vmatpush1.xpose.msra.mxu0 0.0
    %523 = vmatprep.subr.mxu0 0.0
    %524 = vmatpush1.xpose.msra.mxu0 0.0
    %525 = vmatprep.subr.mxu0 0.0
    %526 = vmatpush1.xpose.msra.mxu0 0.0
    %527 = vmatprep.subr.mxu0 0.0
    %528 = vmatpush1.xpose.msra.mxu0 0.0
    %529 = vmatprep.subr.mxu0 0.0
    %530 = vmatpush1.xpose.msra.mxu0 0.0
    %531 = vmatprep.subr.mxu0 0.0
    %532 = vmatpush1.xpose.msra.mxu0 0.0
    %533 = vmatprep.subr.mxu0 0.0
    %534 = vmatpush1.xpose.msra.mxu0 0.0
    %535 = vmatprep.subr.mxu0 0.0
    %536 = vmatpush1.xpose.msra.mxu0 0.0
    %537 = vmatprep.subr.mxu0 0.0
    %538 = vmatpush1.xpose.msra.mxu0 0.0
    %539 = vmatprep.subr.mxu0 0.0
    %540 = vmatpush1.xpose.msra.mxu0 0.0
    %541 = vmatprep.subr.mxu0 0.0
    %542 = vmatpush1.xpose.msra.mxu0 0.0
    %543 = vmatprep.subr.mxu0 0.0
    %544 = vmatpush1.xpose.msra.mxu0 0.0
    %545 = vmatprep.mubr.f32.mxu0 0.0
    %546 = vmatmul.mubr.f32.gmra.mrb[0].mxu0 %v476
    %v547 = vpop.f32.mrb[0].mxu0
    %v548 = vadd.f32 0.0, %v547
    %v549 = vpop.f32.mrb[0].mxu0
    %550 = vdwg.mxu0
    %v551 = vsel %vm398, %v472, -inf
    %552 = vmax.xlane.f32.xlu0 %v551
    %v553 = vpop.xlane.xlu0 %552
    %v554 = vsel %vm398, %v548, -inf
    %555 = vmax.xlane.f32.xlu0 %v554
    %v556 = vpop.xlane.xlu0 %555
    %v557 = vsub.f32 %v472, %v553
    %v558 = vsub.f32 %v548, %v556
    %v559 = vmul.f32 %v557, 1.442695
    %v560 = vpow.pop %v559
    %v561 = vmul.f32 %v558, 1.442695
    %v562 = vpow.pop %v561
    %v563 = vsel %vm398, %v560, 0.0
    %564 = vadd.xlane.f32.xlu0 %v563
    %v565 = vpop.xlane.xlu0 %564
    %v566 = vsel %vm398, %v562, 0.0
    %567 = vadd.xlane.f32.xlu0 %v566
    %v568 = vpop.xlane.xlu0 %567
    %v569 = vrcp.pop %v565
    %v570 = vrcp.pop %v568
    %v571 = vmul.f32 %v560, %v569
    %v572 = vmul.f32 %v562, %v570
    %v574 = vsel %vm398, %v571, 0
    %576 = vmatprep.subr.mxu0 0.0
    %577 = vmatpush1.msra.mxu0 %v388
    %578 = vmatprep.subr.mxu0 0.0
    %579 = vmatpush1.msra.mxu0 0.0
    %580 = vmatprep.subr.mxu0 0.0
    %581 = vmatpush1.msra.mxu0 0.0
    %582 = vmatprep.subr.mxu0 0.0
    %583 = vmatpush1.msra.mxu0 0.0
    %584 = vmatprep.subr.mxu0 0.0
    %585 = vmatpush1.msra.mxu0 0.0
    %586 = vmatprep.subr.mxu0 0.0
    %587 = vmatpush1.msra.mxu0 0.0
    %588 = vmatprep.subr.mxu0 0.0
    %589 = vmatpush1.msra.mxu0 0.0
    %590 = vmatprep.subr.mxu0 0.0
    %591 = vmatpush1.msra.mxu0 0.0
    %592 = vmatprep.subr.mxu0 0.0
    %593 = vmatpush1.msra.mxu0 0.0
    %594 = vmatprep.subr.mxu0 0.0
    %595 = vmatpush1.msra.mxu0 0.0
    %596 = vmatprep.subr.mxu0 0.0
    %597 = vmatpush1.msra.mxu0 0.0
    %598 = vmatprep.subr.mxu0 0.0
    %599 = vmatpush1.msra.mxu0 0.0
    %600 = vmatprep.subr.mxu0 0.0
    %601 = vmatpush1.msra.mxu0 0.0
    %602 = vmatprep.subr.mxu0 0.0
    %603 = vmatpush1.msra.mxu0 0.0
    %604 = vmatprep.subr.mxu0 0.0
    %605 = vmatpush1.msra.mxu0 0.0
    %606 = vmatprep.subr.mxu0 0.0
    %607 = vmatpush1.msra.mxu0 0.0
    %608 = vmatprep.subr.mxu0 0.0
    %609 = vmatpush1.msra.mxu0 0.0
    %610 = vmatprep.subr.mxu0 0.0
    %611 = vmatpush1.msra.mxu0 0.0
    %612 = vmatprep.subr.mxu0 0.0
    %613 = vmatpush1.msra.mxu0 0.0
    %614 = vmatprep.subr.mxu0 0.0
    %615 = vmatpush1.msra.mxu0 0.0
    %616 = vmatprep.subr.mxu0 0.0
    %617 = vmatpush1.msra.mxu0 0.0
    %618 = vmatprep.subr.mxu0 0.0
    %619 = vmatpush1.msra.mxu0 0.0
    %620 = vmatprep.subr.mxu0 0.0
    %621 = vmatpush1.msra.mxu0 0.0
    %622 = vmatprep.subr.mxu0 0.0
    %623 = vmatpush1.msra.mxu0 0.0
    %624 = vmatprep.subr.mxu0 0.0
    %625 = vmatpush1.msra.mxu0 0.0
    %626 = vmatprep.subr.mxu0 0.0
    %627 = vmatpush1.msra.mxu0 0.0
    %628 = vmatprep.subr.mxu0 0.0
    %629 = vmatpush1.msra.mxu0 0.0
    %630 = vmatprep.subr.mxu0 0.0
    %631 = vmatpush1.msra.mxu0 0.0
    %632 = vmatprep.subr.mxu0 0.0
    %633 = vmatpush1.msra.mxu0 0.0
    %634 = vmatprep.subr.mxu0 0.0
    %635 = vmatpush1.msra.mxu0 0.0
    %636 = vmatprep.subr.mxu0 0.0
    %637 = vmatpush1.msra.mxu0 0.0
    %638 = vmatprep.subr.mxu0 0.0
    %639 = vmatpush1.msra.mxu0 0.0
    %640 = vmatprep.mubr.f32.mxu0 0.0
    %641 = vmatmul.mubr.f32.gmra.mrb[0].mxu0 %v574
    %v642 = vpop.f32.mrb[0].mxu0
    %v643 = vadd.f32 0.0, %v642
    %v644 = vpop.f32.mrb[0].mxu0
    %645 = vdwg.mxu0
    %v647 = vsel %vm398, %v572, 0
    %649 = vmatprep.subr.mxu0 0.0
    %650 = vmatpush1.msra.mxu0 %v393
    %651 = vmatprep.subr.mxu0 0.0
    %652 = vmatpush1.msra.mxu0 0.0
    %653 = vmatprep.subr.mxu0 0.0
    %654 = vmatpush1.msra.mxu0 0.0
    %655 = vmatprep.subr.mxu0 0.0
    %656 = vmatpush1.msra.mxu0 0.0
    %657 = vmatprep.subr.mxu0 0.0
    %658 = vmatpush1.msra.mxu0 0.0
    %659 = vmatprep.subr.mxu0 0.0
    %660 = vmatpush1.msra.mxu0 0.0
    %661 = vmatprep.subr.mxu0 0.0
    %662 = vmatpush1.msra.mxu0 0.0
    %663 = vmatprep.subr.mxu0 0.0
    %664 = vmatpush1.msra.mxu0 0.0
    %665 = vmatprep.subr.mxu0 0.0
    %666 = vmatpush1.msra.mxu0 0.0
    %667 = vmatprep.subr.mxu0 0.0
    %668 = vmatpush1.msra.mxu0 0.0
    %669 = vmatprep.subr.mxu0 0.0
    %670 = vmatpush1.msra.mxu0 0.0
    %671 = vmatprep.subr.mxu0 0.0
    %672 = vmatpush1.msra.mxu0 0.0
    %673 = vmatprep.subr.mxu0 0.0
    %674 = vmatpush1.msra.mxu0 0.0
    %675 = vmatprep.subr.mxu0 0.0
    %676 = vmatpush1.msra.mxu0 0.0
    %677 = vmatprep.subr.mxu0 0.0
    %678 = vmatpush1.msra.mxu0 0.0
    %679 = vmatprep.subr.mxu0 0.0
    %680 = vmatpush1.msra.mxu0 0.0
    %681 = vmatprep.subr.mxu0 0.0
    %682 = vmatpush1.msra.mxu0 0.0
    %683 = vmatprep.subr.mxu0 0.0
    %684 = vmatpush1.msra.mxu0 0.0
    %685 = vmatprep.subr.mxu0 0.0
    %686 = vmatpush1.msra.mxu0 0.0
    %687 = vmatprep.subr.mxu0 0.0
    %688 = vmatpush1.msra.mxu0 0.0
    %689 = vmatprep.subr.mxu0 0.0
    %690 = vmatpush1.msra.mxu0 0.0
    %691 = vmatprep.subr.mxu0 0.0
    %692 = vmatpush1.msra.mxu0 0.0
    %693 = vmatprep.subr.mxu0 0.0
    %694 = vmatpush1.msra.mxu0 0.0
    %695 = vmatprep.subr.mxu0 0.0
    %696 = vmatpush1.msra.mxu0 0.0
    %697 = vmatprep.subr.mxu0 0.0
    %698 = vmatpush1.msra.mxu0 0.0
    %699 = vmatprep.subr.mxu0 0.0
    %700 = vmatpush1.msra.mxu0 0.0
    %701 = vmatprep.subr.mxu0 0.0
    %702 = vmatpush1.msra.mxu0 0.0
    %703 = vmatprep.subr.mxu0 0.0
    %704 = vmatpush1.msra.mxu0 0.0
    %705 = vmatprep.subr.mxu0 0.0
    %706 = vmatpush1.msra.mxu0 0.0
    %707 = vmatprep.subr.mxu0 0.0
    %708 = vmatpush1.msra.mxu0 0.0
    %709 = vmatprep.subr.mxu0 0.0
    %710 = vmatpush1.msra.mxu0 0.0
    %711 = vmatprep.subr.mxu0 0.0
    %712 = vmatpush1.msra.mxu0 0.0
    %713 = vmatprep.mubr.f32.mxu0 0.0
    %714 = vmatmul.mubr.f32.gmra.mrb[0].mxu0 %v647
    %v715 = vpop.f32.mrb[0].mxu0
    %v716 = vadd.f32 0.0, %v715
    %v717 = vpop.f32.mrb[0].mxu0
    %718 = vdwg.mxu0
    %v719 = vld [vmem:[#allocation7] sm:$0xff]
    %720 = vrot.lane.b32.xlu0 %v396, 120
    %v721 = vpop.permute.xlu0 %720
    %722 = vrot.lane.b32.xlu0 %v302, 120
    %v723 = vpop.permute.xlu0 %722
    %v724 = vsel %vm398, %v721, 0
    %v726 = vsel %vm398, %v723, 0
    %728 = vmatprep.subr.mxu0 0.0
    %729 = vmatpush1.xpose.msra.mxu0 %v726
    %730 = vmatprep.subr.mxu0 0.0
    %731 = vmatpush1.xpose.msra.mxu0 0.0
    %732 = vmatprep.subr.mxu0 0.0
    %733 = vmatpush1.xpose.msra.mxu0 0.0
    %734 = vmatprep.subr.mxu0 0.0
    %735 = vmatpush1.xpose.msra.mxu0 0.0
    %736 = vmatprep.subr.mxu0 0.0
    %737 = vmatpush1.xpose.msra.mxu0 0.0
    %738 = vmatprep.subr.mxu0 0.0
    %739 = vmatpush1.xpose.msra.mxu0 0.0
    %740 = vmatprep.subr.mxu0 0.0
    %741 = vmatpush1.xpose.msra.mxu0 0.0
    %742 = vmatprep.subr.mxu0 0.0
    %743 = vmatpush1.xpose.msra.mxu0 0.0
    %744 = vmatprep.subr.mxu0 0.0
    %745 = vmatpush1.xpose.msra.mxu0 0.0
    %746 = vmatprep.subr.mxu0 0.0
    %747 = vmatpush1.xpose.msra.mxu0 0.0
    %748 = vmatprep.subr.mxu0 0.0
    %749 = vmatpush1.xpose.msra.mxu0 0.0
    %750 = vmatprep.subr.mxu0 0.0
    %751 = vmatpush1.xpose.msra.mxu0 0.0
    %752 = vmatprep.subr.mxu0 0.0
    %753 = vmatpush1.xpose.msra.mxu0 0.0
    %754 = vmatprep.subr.mxu0 0.0
    %755 = vmatpush1.xpose.msra.mxu0 0.0
    %756 = vmatprep.subr.mxu0 0.0
    %757 = vmatpush1.xpose.msra.mxu0 0.0
    %758 = vmatprep.subr.mxu0 0.0
    %759 = vmatpush1.xpose.msra.mxu0 0.0
    %760 = vmatprep.subr.mxu0 0.0
    %761 = vmatpush1.xpose.msra.mxu0 0.0
    %762 = vmatprep.subr.mxu0 0.0
    %763 = vmatpush1.xpose.msra.mxu0 0.0
    %764 = vmatprep.subr.mxu0 0.0
    %765 = vmatpush1.xpose.msra.mxu0 0.0
    %766 = vmatprep.subr.mxu0 0.0
    %767 = vmatpush1.xpose.msra.mxu0 0.0
    %768 = vmatprep.subr.mxu0 0.0
    %769 = vmatpush1.xpose.msra.mxu0 0.0
    %770 = vmatprep.subr.mxu0 0.0
    %771 = vmatpush1.xpose.msra.mxu0 0.0
    %772 = vmatprep.subr.mxu0 0.0
    %773 = vmatpush1.xpose.msra.mxu0 0.0
    %774 = vmatprep.subr.mxu0 0.0
    %775 = vmatpush1.xpose.msra.mxu0 0.0
    %776 = vmatprep.subr.mxu0 0.0
    %777 = vmatpush1.xpose.msra.mxu0 0.0
    %778 = vmatprep.subr.mxu0 0.0
    %779 = vmatpush1.xpose.msra.mxu0 0.0
    %780 = vmatprep.subr.mxu0 0.0
    %781 = vmatpush1.xpose.msra.mxu0 0.0
    %782 = vmatprep.subr.mxu0 0.0
    %783 = vmatpush1.xpose.msra.mxu0 0.0
    %784 = vmatprep.subr.mxu0 0.0
    %785 = vmatpush1.xpose.msra.mxu0 0.0
    %786 = vmatprep.subr.mxu0 0.0
    %787 = vmatpush1.xpose.msra.mxu0 0.0
    %788 = vmatprep.subr.mxu0 0.0
    %789 = vmatpush1.xpose.msra.mxu0 0.0
    %790 = vmatprep.subr.mxu0 0.0
    %791 = vmatpush1.xpose.msra.mxu0 0.0
    %792 = vmatprep.mubr.f32.mxu0 0.0
    %793 = vmatmul.mubr.f32.gmra.mrb[0].mxu0 %v724
    %v794 = vpop.f32.mrb[0].mxu0
    %v795 = vadd.f32 0.0, %v794
    %v796 = vpop.f32.mrb[0].mxu0
    %797 = vdwg.mxu0
    %798 = vrot.lane.b32.xlu0 %v397, 120
    %v799 = vpop.permute.xlu0 %798
    %800 = vrot.lane.b32.xlu0 %v307, 120
    %v801 = vpop.permute.xlu0 %800
    %v802 = vsel %vm398, %v799, 0
    %v804 = vsel %vm398, %v801, 0
    %806 = vmatprep.subr.mxu0 0.0
    %807 = vmatpush1.xpose.msra.mxu0 %v804
    %808 = vmatprep.subr.mxu0 0.0
    %809 = vmatpush1.xpose.msra.mxu0 0.0
    %810 = vmatprep.subr.mxu0 0.0
    %811 = vmatpush1.xpose.msra.mxu0 0.0
    %812 = vmatprep.subr.mxu0 0.0
    %813 = vmatpush1.xpose.msra.mxu0 0.0
    %814 = vmatprep.subr.mxu0 0.0
    %815 = vmatpush1.xpose.msra.mxu0 0.0
    %816 = vmatprep.subr.mxu0 0.0
    %817 = vmatpush1.xpose.msra.mxu0 0.0
    %818 = vmatprep.subr.mxu0 0.0
    %819 = vmatpush1.xpose.msra.mxu0 0.0
    %820 = vmatprep.subr.mxu0 0.0
    %821 = vmatpush1.xpose.msra.mxu0 0.0
    %822 = vmatprep.subr.mxu0 0.0
    %823 = vmatpush1.xpose.msra.mxu0 0.0
    %824 = vmatprep.subr.mxu0 0.0
    %825 = vmatpush1.xpose.msra.mxu0 0.0
    %826 = vmatprep.subr.mxu0 0.0
    %827 = vmatpush1.xpose.msra.mxu0 0.0
    %828 = vmatprep.subr.mxu0 0.0
    %829 = vmatpush1.xpose.msra.mxu0 0.0
    %830 = vmatprep.subr.mxu0 0.0
    %831 = vmatpush1.xpose.msra.mxu0 0.0
    %832 = vmatprep.subr.mxu0 0.0
    %833 = vmatpush1.xpose.msra.mxu0 0.0
    %834 = vmatprep.subr.mxu0 0.0
    %835 = vmatpush1.xpose.msra.mxu0 0.0
    %836 = vmatprep.subr.mxu0 0.0
    %837 = vmatpush1.xpose.msra.mxu0 0.0
    %838 = vmatprep.subr.mxu0 0.0
    %839 = vmatpush1.xpose.msra.mxu0 0.0
    %840 = vmatprep.subr.mxu0 0.0
    %841 = vmatpush1.xpose.msra.mxu0 0.0
    %842 = vmatprep.subr.mxu0 0.0
    %843 = vmatpush1.xpose.msra.mxu0 0.0
    %844 = vmatprep.subr.mxu0 0.0
    %845 = vmatpush1.xpose.msra.mxu0 0.0
    %846 = vmatprep.subr.mxu0 0.0
    %847 = vmatpush1.xpose.msra.mxu0 0.0
    %848 = vmatprep.subr.mxu0 0.0
    %849 = vmatpush1.xpose.msra.mxu0 0.0
    %850 = vmatprep.subr.mxu0 0.0
    %851 = vmatpush1.xpose.msra.mxu0 0.0
    %852 = vmatprep.subr.mxu0 0.0
    %853 = vmatpush1.xpose.msra.mxu0 0.0
    %854 = vmatprep.subr.mxu0 0.0
    %855 = vmatpush1.xpose.msra.mxu0 0.0
    %856 = vmatprep.subr.mxu0 0.0
    %857 = vmatpush1.xpose.msra.mxu0 0.0
    %858 = vmatprep.subr.mxu0 0.0
    %859 = vmatpush1.xpose.msra.mxu0 0.0
    %860 = vmatprep.subr.mxu0 0.0
    %861 = vmatpush1.xpose.msra.mxu0 0.0
    %862 = vmatprep.subr.mxu0 0.0
    %863 = vmatpush1.xpose.msra.mxu0 0.0
    %864 = vmatprep.subr.mxu0 0.0
    %865 = vmatpush1.xpose.msra.mxu0 0.0
    %866 = vmatprep.subr.mxu0 0.0
    %867 = vmatpush1.xpose.msra.mxu0 0.0
    %868 = vmatprep.subr.mxu0 0.0
    %869 = vmatpush1.xpose.msra.mxu0 0.0
    %870 = vmatprep.mubr.f32.mxu0 0.0
    %871 = vmatmul.mubr.f32.gmra.mrb[0].mxu0 %v802
    %v872 = vpop.f32.mrb[0].mxu0
    %v873 = vadd.f32 0.0, %v872
    %v874 = vpop.f32.mrb[0].mxu0
    %875 = vdwg.mxu0
    %v876 = vsel %vm398, %v795, -inf
    %877 = vmax.xlane.f32.xlu0 %v876
    %v878 = vpop.xlane.xlu0 %877
    %v879 = vsel %vm398, %v873, -inf
    %880 = vmax.xlane.f32.xlu0 %v879
    %v881 = vpop.xlane.xlu0 %880
    %v882 = vsub.f32 %v795, %v878
    %v883 = vsub.f32 %v873, %v881
    %v884 = vmul.f32 %v882, 1.442695
    %v885 = vpow.pop %v884
    %v886 = vmul.f32 %v883, 1.442695
    %v887 = vpow.pop %v886
    %v888 = vsel %vm398, %v885, 0.0
    %889 = vadd.xlane.f32.xlu0 %v888
    %v890 = vpop.xlane.xlu0 %889
    %v891 = vsel %vm398, %v887, 0.0
    %892 = vadd.xlane.f32.xlu0 %v891
    %v893 = vpop.xlane.xlu0 %892
    %v894 = vrcp.pop %v890
    %v895 = vrcp.pop %v893
    %v896 = vmul.f32 %v885, %v894
    %v897 = vmul.f32 %v887, %v895
    %899 = vrot.lane.b32.xlu0 %v388, 120
    %v900 = vpop.permute.xlu0 %899
    %v903 = vsel %vm398, %v896, 0
    %905 = vmatprep.subr.mxu0 0.0
    %906 = vmatpush1.msra.mxu0 %v900
    %907 = vmatprep.subr.mxu0 0.0
    %908 = vmatpush1.msra.mxu0 0.0
    %909 = vmatprep.subr.mxu0 0.0
    %910 = vmatpush1.msra.mxu0 0.0
    %911 = vmatprep.subr.mxu0 0.0
    %912 = vmatpush1.msra.mxu0 0.0
    %913 = vmatprep.subr.mxu0 0.0
    %914 = vmatpush1.msra.mxu0 0.0
    %915 = vmatprep.subr.mxu0 0.0
    %916 = vmatpush1.msra.mxu0 0.0
    %917 = vmatprep.subr.mxu0 0.0
    %918 = vmatpush1.msra.mxu0 0.0
    %919 = vmatprep.subr.mxu0 0.0
    %920 = vmatpush1.msra.mxu0 0.0
    %921 = vmatprep.subr.mxu0 0.0
    %922 = vmatpush1.msra.mxu0 0.0
    %923 = vmatprep.subr.mxu0 0.0
    %924 = vmatpush1.msra.mxu0 0.0
    %925 = vmatprep.subr.mxu0 0.0
    %926 = vmatpush1.msra.mxu0 0.0
    %927 = vmatprep.subr.mxu0 0.0
    %928 = vmatpush1.msra.mxu0 0.0
    %929 = vmatprep.subr.mxu0 0.0
    %930 = vmatpush1.msra.mxu0 0.0
    %931 = vmatprep.subr.mxu0 0.0
    %932 = vmatpush1.msra.mxu0 0.0
    %933 = vmatprep.subr.mxu0 0.0
    %934 = vmatpush1.msra.mxu0 0.0
    %935 = vmatprep.subr.mxu0 0.0
    %936 = vmatpush1.msra.mxu0 0.0
    %937 = vmatprep.subr.mxu0 0.0
    %938 = vmatpush1.msra.mxu0 0.0
    %939 = vmatprep.subr.mxu0 0.0
    %940 = vmatpush1.msra.mxu0 0.0
    %941 = vmatprep.subr.mxu0 0.0
    %942 = vmatpush1.msra.mxu0 0.0
    %943 = vmatprep.subr.mxu0 0.0
    %944 = vmatpush1.msra.mxu0 0.0
    %945 = vmatprep.subr.mxu0 0.0
    %946 = vmatpush1.msra.mxu0 0.0
    %947 = vmatprep.subr.mxu0 0.0
    %948 = vmatpush1.msra.mxu0 0.0
    %949 = vmatprep.subr.mxu0 0.0
    %950 = vmatpush1.msra.mxu0 0.0
    %951 = vmatprep.subr.mxu0 0.0
    %952 = vmatpush1.msra.mxu0 0.0
    %953 = vmatprep.subr.mxu0 0.0
    %954 = vmatpush1.msra.mxu0 0.0
    %955 = vmatprep.subr.mxu0 0.0
    %956 = vmatpush1.msra.mxu0 0.0
    %957 = vmatprep.subr.mxu0 0.0
    %958 = vmatpush1.msra.mxu0 0.0
    %959 = vmatprep.subr.mxu0 0.0
    %960 = vmatpush1.msra.mxu0 0.0
    %961 = vmatprep.subr.mxu0 0.0
    %962 = vmatpush1.msra.mxu0 0.0
    %963 = vmatprep.subr.mxu0 0.0
    %964 = vmatpush1.msra.mxu0 0.0
    %965 = vmatprep.subr.mxu0 0.0
    %966 = vmatpush1.msra.mxu0 0.0
    %967 = vmatprep.subr.mxu0 0.0
    %968 = vmatpush1.msra.mxu0 0.0
    %969 = vmatprep.mubr.f32.mxu0 0.0
    %970 = vmatmul.mubr.f32.gmra.mrb[0].mxu0 %v903
    %v971 = vpop.f32.mrb[0].mxu0
    %v972 = vadd.f32 0.0, %v971
    %v973 = vpop.f32.mrb[0].mxu0
    %974 = vdwg.mxu0
    %976 = vrot.lane.b32.xlu0 %v393, 120
    %v977 = vpop.permute.xlu0 %976
    %v980 = vsel %vm398, %v897, 0
    %982 = vmatprep.subr.mxu0 0.0
    %983 = vmatpush1.msra.mxu0 %v977
    %984 = vmatprep.subr.mxu0 0.0
    %985 = vmatpush1.msra.mxu0 0.0
    %986 = vmatprep.subr.mxu0 0.0
    %987 = vmatpush1.msra.mxu0 0.0
    %988 = vmatprep.subr.mxu0 0.0
    %989 = vmatpush1.msra.mxu0 0.0
    %990 = vmatprep.subr.mxu0 0.0
    %991 = vmatpush1.msra.mxu0 0.0
    %992 = vmatprep.subr.mxu0 0.0
    %993 = vmatpush1.msra.mxu0 0.0
    %994 = vmatprep.subr.mxu0 0.0
    %995 = vmatpush1.msra.mxu0 0.0
    %996 = vmatprep.subr.mxu0 0.0
    %997 = vmatpush1.msra.mxu0 0.0
    %998 = vmatprep.subr.mxu0 0.0
    %999 = vmatpush1.msra.mxu0 0.0
    %1000 = vmatprep.subr.mxu0 0.0
    %1001 = vmatpush1.msra.mxu0 0.0
    %1002 = vmatprep.subr.mxu0 0.0
    %1003 = vmatpush1.msra.mxu0 0.0
    %1004 = vmatprep.subr.mxu0 0.0
    %1005 = vmatpush1.msra.mxu0 0.0
    %1006 = vmatprep.subr.mxu0 0.0
    %1007 = vmatpush1.msra.mxu0 0.0
    %1008 = vmatprep.subr.mxu0 0.0
    %1009 = vmatpush1.msra.mxu0 0.0
    %1010 = vmatprep.subr.mxu0 0.0
    %1011 = vmatpush1.msra.mxu0 0.0
    %1012 = vmatprep.subr.mxu0 0.0
    %1013 = vmatpush1.msra.mxu0 0.0
    %1014 = vmatprep.subr.mxu0 0.0
    %1015 = vmatpush1.msra.mxu0 0.0
    %1016 = vmatprep.subr.mxu0 0.0
    %1017 = vmatpush1.msra.mxu0 0.0
    %1018 = vmatprep.subr.mxu0 0.0
    %1019 = vmatpush1.msra.mxu0 0.0
    %1020 = vmatprep.subr.mxu0 0.0
    %1021 = vmatpush1.msra.mxu0 0.0
    %1022 = vmatprep.subr.mxu0 0.0
    %1023 = vmatpush1.msra.mxu0 0.0
    %1024 = vmatprep.subr.mxu0 0.0
    %1025 = vmatpush1.msra.mxu0 0.0
    %1026 = vmatprep.subr.mxu0 0.0
    %1027 = vmatpush1.msra.mxu0 0.0
    %1028 = vmatprep.subr.mxu0 0.0
    %1029 = vmatpush1.msra.mxu0 0.0
    %1030 = vmatprep.subr.mxu0 0.0
    %1031 = vmatpush1.msra.mxu0 0.0
    %1032 = vmatprep.subr.mxu0 0.0
    %1033 = vmatpush1.msra.mxu0 0.0
    %1034 = vmatprep.subr.mxu0 0.0
    %1035 = vmatpush1.msra.mxu0 0.0
    %1036 = vmatprep.subr.mxu0 0.0
    %1037 = vmatpush1.msra.mxu0 0.0
    %1038 = vmatprep.subr.mxu0 0.0
    %1039 = vmatpush1.msra.mxu0 0.0
    %1040 = vmatprep.subr.mxu0 0.0
    %1041 = vmatpush1.msra.mxu0 0.0
    %1042 = vmatprep.subr.mxu0 0.0
    %1043 = vmatpush1.msra.mxu0 0.0
    %1044 = vmatprep.subr.mxu0 0.0
    %1045 = vmatpush1.msra.mxu0 0.0
    %1046 = vmatprep.mubr.f32.mxu0 0.0
    %1047 = vmatmul.mubr.f32.gmra.mrb[0].mxu0 %v980
    %v1048 = vpop.f32.mrb[0].mxu0
    %v1049 = vadd.f32 0.0, %v1048
    %v1050 = vpop.f32.mrb[0].mxu0
    %1051 = vdwg.mxu0
    %v1052 = vld [vmem:[#allocation7 + $0x8] sm:$0xff]
    %v1054 = vsel %vm398, %v972, 0
    %v1057 = vsel %vm398, %v1049, 0
    %1059 = vmatprep.subr.mxu0 0.0
    %1060 = vmatpush1.msra.mxu0 %v1052
    %1061 = vmatprep.subr.mxu0 0.0
    %1062 = vmatpush1.msra.mxu0 0.0
    %1063 = vmatprep.subr.mxu0 0.0
    %1064 = vmatpush1.msra.mxu0 0.0
    %1065 = vmatprep.subr.mxu0 0.0
    %1066 = vmatpush1.msra.mxu0 0.0
    %1067 = vmatprep.subr.mxu0 0.0
    %1068 = vmatpush1.msra.mxu0 0.0
    %1069 = vmatprep.subr.mxu0 0.0
    %1070 = vmatpush1.msra.mxu0 0.0
    %1071 = vmatprep.subr.mxu0 0.0
    %1072 = vmatpush1.msra.mxu0 0.0
    %1073 = vmatprep.subr.mxu0 0.0
    %1074 = vmatpush1.msra.mxu0 0.0
    %1075 = vmatprep.subr.mxu0 0.0
    %1076 = vmatpush1.msra.mxu0 0.0
    %1077 = vmatprep.subr.mxu0 0.0
    %1078 = vmatpush1.msra.mxu0 0.0
    %1079 = vmatprep.subr.mxu0 0.0
    %1080 = vmatpush1.msra.mxu0 0.0
    %1081 = vmatprep.subr.mxu0 0.0
    %1082 = vmatpush1.msra.mxu0 0.0
    %1083 = vmatprep.subr.mxu0 0.0
    %1084 = vmatpush1.msra.mxu0 0.0
    %1085 = vmatprep.subr.mxu0 0.0
    %1086 = vmatpush1.msra.mxu0 0.0
    %1087 = vmatprep.subr.mxu0 0.0
    %1088 = vmatpush1.msra.mxu0 0.0
    %1089 = vmatprep.subr.mxu0 0.0
    %1090 = vmatpush1.msra.mxu0 0.0
    %1091 = vmatprep.subr.mxu0 0.0
    %1092 = vmatpush1.msra.mxu0 0.0
    %1093 = vmatprep.subr.mxu0 0.0
    %1094 = vmatpush1.msra.mxu0 0.0
    %1095 = vmatprep.subr.mxu0 0.0
    %1096 = vmatpush1.msra.mxu0 0.0
    %1097 = vmatprep.subr.mxu0 0.0
    %1098 = vmatpush1.msra.mxu0 0.0
    %1099 = vmatprep.subr.mxu0 0.0
    %1100 = vmatpush1.msra.mxu0 0.0
    %1101 = vmatprep.subr.mxu0 0.0
    %1102 = vmatpush1.msra.mxu0 0.0
    %1103 = vmatprep.subr.mxu0 0.0
    %1104 = vmatpush1.msra.mxu0 0.0
    %1105 = vmatprep.subr.mxu0 0.0
    %1106 = vmatpush1.msra.mxu0 0.0
    %1107 = vmatprep.subr.mxu0 0.0
    %1108 = vmatpush1.msra.mxu0 0.0
    %1109 = vmatprep.subr.mxu0 0.0
    %1110 = vmatpush1.msra.mxu0 0.0
    %1111 = vmatprep.subr.mxu0 0.0
    %1112 = vmatpush1.msra.mxu0 0.0
    %1113 = vmatprep.subr.mxu0 0.0
    %1114 = vmatpush1.msra.mxu0 0.0
    %1115 = vmatprep.subr.mxu0 0.0
    %1116 = vmatpush1.msra.mxu0 0.0
    %1117 = vmatprep.subr.mxu0 0.0
    %1118 = vmatpush1.msra.mxu0 0.0
    %1119 = vmatprep.subr.mxu0 0.0
    %1120 = vmatpush1.msra.mxu0 0.0
    %1121 = vmatprep.subr.mxu0 0.0
    %1122 = vmatpush1.msra.mxu0 0.0
    %1123 = vmatprep.mubr.f32.mxu0 0.0
    %1124 = vmatmul.mubr.f32.gmra.mrb[0].mxu0 %v1054
    %v1125 = vpop.f32.mrb[0].mxu0
    %v1126 = vadd.f32 0.0, %v1125
    %v1127 = vpop.f32.mrb[0].mxu0
    %1128 = vmatprep.mubr.f32.mxu0 0.0
    %1129 = vmatmul.mubr.f32.gmra.mrb[0].mxu0 %v1057
    %v1130 = vpop.f32.mrb[0].mxu0
    %v1131 = vadd.f32 0.0, %v1130
    %v1132 = vpop.f32.mrb[0].mxu0
    %1133 = vdwg.mxu0
    %v1135 = vsel %vm398, %v643, 0
    %v1138 = vsel %vm398, %v716, 0
    %1140 = vmatprep.subr.mxu0 0.0
    %1141 = vmatpush1.msra.mxu0 %v719
    %1142 = vmatprep.subr.mxu0 0.0
    %1143 = vmatpush1.msra.mxu0 0.0
    %1144 = vmatprep.subr.mxu0 0.0
    %1145 = vmatpush1.msra.mxu0 0.0
    %1146 = vmatprep.subr.mxu0 0.0
    %1147 = vmatpush1.msra.mxu0 0.0
    %1148 = vmatprep.subr.mxu0 0.0
    %1149 = vmatpush1.msra.mxu0 0.0
    %1150 = vmatprep.subr.mxu0 0.0
    %1151 = vmatpush1.msra.mxu0 0.0
    %1152 = vmatprep.subr.mxu0 0.0
    %1153 = vmatpush1.msra.mxu0 0.0
    %1154 = vmatprep.subr.mxu0 0.0
    %1155 = vmatpush1.msra.mxu0 0.0
    %1156 = vmatprep.subr.mxu0 0.0
    %1157 = vmatpush1.msra.mxu0 0.0
    %1158 = vmatprep.subr.mxu0 0.0
    %1159 = vmatpush1.msra.mxu0 0.0
    %1160 = vmatprep.subr.mxu0 0.0
    %1161 = vmatpush1.msra.mxu0 0.0
    %1162 = vmatprep.subr.mxu0 0.0
    %1163 = vmatpush1.msra.mxu0 0.0
    %1164 = vmatprep.subr.mxu0 0.0
    %1165 = vmatpush1.msra.mxu0 0.0
    %1166 = vmatprep.subr.mxu0 0.0
    %1167 = vmatpush1.msra.mxu0 0.0
    %1168 = vmatprep.subr.mxu0 0.0
    %1169 = vmatpush1.msra.mxu0 0.0
    %1170 = vmatprep.subr.mxu0 0.0
    %1171 = vmatpush1.msra.mxu0 0.0
    %1172 = vmatprep.subr.mxu0 0.0
    %1173 = vmatpush1.msra.mxu0 0.0
    %1174 = vmatprep.subr.mxu0 0.0
    %1175 = vmatpush1.msra.mxu0 0.0
    %1176 = vmatprep.subr.mxu0 0.0
    %1177 = vmatpush1.msra.mxu0 0.0
    %1178 = vmatprep.subr.mxu0 0.0
    %1179 = vmatpush1.msra.mxu0 0.0
    %1180 = vmatprep.subr.mxu0 0.0
    %1181 = vmatpush1.msra.mxu0 0.0
    %1182 = vmatprep.subr.mxu0 0.0
    %1183 = vmatpush1.msra.mxu0 0.0
    %1184 = vmatprep.subr.mxu0 0.0
    %1185 = vmatpush1.msra.mxu0 0.0
    %1186 = vmatprep.subr.mxu0 0.0
    %1187 = vmatpush1.msra.mxu0 0.0
    %1188 = vmatprep.subr.mxu0 0.0
    %1189 = vmatpush1.msra.mxu0 0.0
    %1190 = vmatprep.subr.mxu0 0.0
    %1191 = vmatpush1.msra.mxu0 0.0
    %1192 = vmatprep.subr.mxu0 0.0
    %1193 = vmatpush1.msra.mxu0 0.0
    %1194 = vmatprep.subr.mxu0 0.0
    %1195 = vmatpush1.msra.mxu0 0.0
    %1196 = vmatprep.subr.mxu0 0.0
    %1197 = vmatpush1.msra.mxu0 0.0
    %1198 = vmatprep.subr.mxu0 0.0
    %1199 = vmatpush1.msra.mxu0 0.0
    %1200 = vmatprep.subr.mxu0 0.0
    %1201 = vmatpush1.msra.mxu0 0.0
    %1202 = vmatprep.subr.mxu0 0.0
    %1203 = vmatpush1.msra.mxu0 0.0
    %1204 = vmatprep.mubr.f32.mxu0 0.0
    %1205 = vmatmul.mubr.f32.gmra.mrb[0].mxu0 %v1135
    %v1206 = vpop.f32.mrb[0].mxu0
    %v1207 = vadd.f32 %v1126, %v1206
    %v1208 = vpop.f32.mrb[0].mxu0
    %1209 = vmatprep.mubr.f32.mxu0 0.0
    %1210 = vmatmul.mubr.f32.gmra.mrb[0].mxu0 %v1138
    %v1211 = vpop.f32.mrb[0].mxu0
    %v1212 = vadd.f32 %v1131, %v1211
    %v1213 = vpop.f32.mrb[0].mxu0
    %1214 = vdwg.mxu0
    %1215 = vrot.lane.b32.xlu0 %v396, 112
    %v1216 = vpop.permute.xlu0 %1215
    %1217 = vrot.lane.b32.xlu0 %v302, 112
    %v1218 = vpop.permute.xlu0 %1217
    %v1219 = vsel %vm398, %v1216, 0
    %v1221 = vsel %vm398, %v1218, 0
    %1223 = vmatprep.subr.mxu0 0.0
    %1224 = vmatpush1.xpose.msra.mxu0 %v1221
    %1225 = vmatprep.subr.mxu0 0.0
    %1226 = vmatpush1.xpose.msra.mxu0 0.0
    %1227 = vmatprep.subr.mxu0 0.0
    %1228 = vmatpush1.xpose.msra.mxu0 0.0
    %1229 = vmatprep.subr.mxu0 0.0
    %1230 = vmatpush1.xpose.msra.mxu0 0.0
    %1231 = vmatprep.subr.mxu0 0.0
    %1232 = vmatpush1.xpose.msra.mxu0 0.0
    %1233 = vmatprep.subr.mxu0 0.0
    %1234 = vmatpush1.xpose.msra.mxu0 0.0
    %1235 = vmatprep.subr.mxu0 0.0
    %1236 = vmatpush1.xpose.msra.mxu0 0.0
    %1237 = vmatprep.subr.mxu0 0.0
    %1238 = vmatpush1.xpose.msra.mxu0 0.0
    %1239 = vmatprep.subr.mxu0 0.0
    %1240 = vmatpush1.xpose.msra.mxu0 0.0
    %1241 = vmatprep.subr.mxu0 0.0
    %1242 = vmatpush1.xpose.msra.mxu0 0.0
    %1243 = vmatprep.subr.mxu0 0.0
    %1244 = vmatpush1.xpose.msra.mxu0 0.0
    %1245 = vmatprep.subr.mxu0 0.0
    %1246 = vmatpush1.xpose.msra.mxu0 0.0
    %1247 = vmatprep.subr.mxu0 0.0
    %1248 = vmatpush1.xpose.msra.mxu0 0.0
    %1249 = vmatprep.subr.mxu0 0.0
    %1250 = vmatpush1.xpose.msra.mxu0 0.0
    %1251 = vmatprep.subr.mxu0 0.0
    %1252 = vmatpush1.xpose.msra.mxu0 0.0
    %1253 = vmatprep.subr.mxu0 0.0
    %1254 = vmatpush1.xpose.msra.mxu0 0.0
    %1255 = vmatprep.subr.mxu0 0.0
    %1256 = vmatpush1.xpose.msra.mxu0 0.0
    %1257 = vmatprep.subr.mxu0 0.0
    %1258 = vmatpush1.xpose.msra.mxu0 0.0
    %1259 = vmatprep.subr.mxu0 0.0
    %1260 = vmatpush1.xpose.msra.mxu0 0.0
    %1261 = vmatprep.subr.mxu0 0.0
    %1262 = vmatpush1.xpose.msra.mxu0 0.0
    %1263 = vmatprep.subr.mxu0 0.0
    %1264 = vmatpush1.xpose.msra.mxu0 0.0
    %1265 = vmatprep.subr.mxu0 0.0
    %1266 = vmatpush1.xpose.msra.mxu0 0.0
    %1267 = vmatprep.subr.mxu0 0.0
    %1268 = vmatpush1.xpose.msra.mxu0 0.0
    %1269 = vmatprep.subr.mxu0 0.0
    %1270 = vmatpush1.xpose.msra.mxu0 0.0
    %1271 = vmatprep.subr.mxu0 0.0
    %1272 = vmatpush1.xpose.msra.mxu0 0.0
    %1273 = vmatprep.subr.mxu0 0.0
    %1274 = vmatpush1.xpose.msra.mxu0 0.0
    %1275 = vmatprep.subr.mxu0 0.0
    %1276 = vmatpush1.xpose.msra.mxu0 0.0
    %1277 = vmatprep.subr.mxu0 0.0
    %1278 = vmatpush1.xpose.msra.mxu0 0.0
    %1279 = vmatprep.subr.mxu0 0.0
    %1280 = vmatpush1.xpose.msra.mxu0 0.0
    %1281 = vmatprep.subr.mxu0 0.0
    %1282 = vmatpush1.xpose.msra.mxu0 0.0
    %1283 = vmatprep.subr.mxu0 0.0
    %1284 = vmatpush1.xpose.msra.mxu0 0.0
    %1285 = vmatprep.subr.mxu0 0.0
    %1286 = vmatpush1.xpose.msra.mxu0 0.0
    %1287 = vmatprep.mubr.f32.mxu0 0.0
    %1288 = vmatmul.mubr.f32.gmra.mrb[0].mxu0 %v1219
    %v1289 = vpop.f32.mrb[0].mxu0
    %v1290 = vadd.f32 0.0, %v1289
    %v1291 = vpop.f32.mrb[0].mxu0
    %1292 = vdwg.mxu0
    %1293 = vrot.lane.b32.xlu0 %v397, 112
    %v1294 = vpop.permute.xlu0 %1293
    %1295 = vrot.lane.b32.xlu0 %v307, 112
    %v1296 = vpop.permute.xlu0 %1295
    %v1297 = vsel %vm398, %v1294, 0
    %v1299 = vsel %vm398, %v1296, 0
    %1301 = vmatprep.subr.mxu0 0.0
    %1302 = vmatpush1.xpose.msra.mxu0 %v1299
    %1303 = vmatprep.subr.mxu0 0.0
    %1304 = vmatpush1.xpose.msra.mxu0 0.0
    %1305 = vmatprep.subr.mxu0 0.0
    %1306 = vmatpush1.xpose.msra.mxu0 0.0
    %1307 = vmatprep.subr.mxu0 0.0
    %1308 = vmatpush1.xpose.msra.mxu0 0.0
    %1309 = vmatprep.subr.mxu0 0.0
    %1310 = vmatpush1.xpose.msra.mxu0 0.0
    %1311 = vmatprep.subr.mxu0 0.0
    %1312 = vmatpush1.xpose.msra.mxu0 0.0
    %1313 = vmatprep.subr.mxu0 0.0
    %1314 = vmatpush1.xpose.msra.mxu0 0.0
    %1315 = vmatprep.subr.mxu0 0.0
    %1316 = vmatpush1.xpose.msra.mxu0 0.0
    %1317 = vmatprep.subr.mxu0 0.0
    %1318 = vmatpush1.xpose.msra.mxu0 0.0
    %1319 = vmatprep.subr.mxu0 0.0
    %1320 = vmatpush1.xpose.msra.mxu0 0.0
    %1321 = vmatprep.subr.mxu0 0.0
    %1322 = vmatpush1.xpose.msra.mxu0 0.0
    %1323 = vmatprep.subr.mxu0 0.0
    %1324 = vmatpush1.xpose.msra.mxu0 0.0
    %1325 = vmatprep.subr.mxu0 0.0
    %1326 = vmatpush1.xpose.msra.mxu0 0.0
    %1327 = vmatprep.subr.mxu0 0.0
    %1328 = vmatpush1.xpose.msra.mxu0 0.0
    %1329 = vmatprep.subr.mxu0 0.0
    %1330 = vmatpush1.xpose.msra.mxu0 0.0
    %1331 = vmatprep.subr.mxu0 0.0
    %1332 = vmatpush1.xpose.msra.mxu0 0.0
    %1333 = vmatprep.subr.mxu0 0.0
    %1334 = vmatpush1.xpose.msra.mxu0 0.0
    %1335 = vmatprep.subr.mxu0 0.0
    %1336 = vmatpush1.xpose.msra.mxu0 0.0
    %1337 = vmatprep.subr.mxu0 0.0
    %1338 = vmatpush1.xpose.msra.mxu0 0.0
    %1339 = vmatprep.subr.mxu0 0.0
    %1340 = vmatpush1.xpose.msra.mxu0 0.0
    %1341 = vmatprep.subr.mxu0 0.0
    %1342 = vmatpush1.xpose.msra.mxu0 0.0
    %1343 = vmatprep.subr.mxu0 0.0
    %1344 = vmatpush1.xpose.msra.mxu0 0.0
    %1345 = vmatprep.subr.mxu0 0.0
    %1346 = vmatpush1.xpose.msra.mxu0 0.0
    %1347 = vmatprep.subr.mxu0 0.0
    %1348 = vmatpush1.xpose.msra.mxu0 0.0
    %1349 = vmatprep.subr.mxu0 0.0
    %1350 = vmatpush1.xpose.msra.mxu0 0.0
    %1351 = vmatprep.subr.mxu0 0.0
    %1352 = vmatpush1.xpose.msra.mxu0 0.0
    %1353 = vmatprep.subr.mxu0 0.0
    %1354 = vmatpush1.xpose.msra.mxu0 0.0
    %1355 = vmatprep.subr.mxu0 0.0
    %1356 = vmatpush1.xpose.msra.mxu0 0.0
    %1357 = vmatprep.subr.mxu0 0.0
    %1358 = vmatpush1.xpose.msra.mxu0 0.0
    %1359 = vmatprep.subr.mxu0 0.0
    %1360 = vmatpush1.xpose.msra.mxu0 0.0
    %1361 = vmatprep.subr.mxu0 0.0
    %1362 = vmatpush1.xpose.msra.mxu0 0.0
    %1363 = vmatprep.subr.mxu0 0.0
    %1364 = vmatpush1.xpose.msra.mxu0 0.0
    %1365 = vmatprep.mubr.f32.mxu0 0.0
    %1366 = vmatmul.mubr.f32.gmra.mrb[0].mxu0 %v1297
    %v1367 = vpop.f32.mrb[0].mxu0
    %v1368 = vadd.f32 0.0, %v1367
    %v1369 = vpop.f32.mrb[0].mxu0
    %1370 = vdwg.mxu0
    %v1371 = vsel %vm398, %v1290, -inf
    %1372 = vmax.xlane.f32.xlu0 %v1371
    %v1373 = vpop.xlane.xlu0 %1372
    %v1374 = vsel %vm398, %v1368, -inf
    %1375 = vmax.xlane.f32.xlu0 %v1374
    %v1376 = vpop.xlane.xlu0 %1375
    %v1377 = vsub.f32 %v1290, %v1373
    %v1378 = vsub.f32 %v1368, %v1376
    %v1379 = vmul.f32 %v1377, 1.442695
    %v1380 = vpow.pop %v1379
    %v1381 = vmul.f32 %v1378, 1.442695
    %v1382 = vpow.pop %v1381
    %v1383 = vsel %vm398, %v1380, 0.0
    %1384 = vadd.xlane.f32.xlu0 %v1383
    %v1385 = vpop.xlane.xlu0 %1384
    %v1386 = vsel %vm398, %v1382, 0.0
    %1387 = vadd.xlane.f32.xlu0 %v1386
    %v1388 = vpop.xlane.xlu0 %1387
    %v1389 = vrcp.pop %v1385
    %v1390 = vrcp.pop %v1388
    %v1391 = vmul.f32 %v1380, %v1389
    %v1392 = vmul.f32 %v1382, %v1390
    %1393 = vrot.lane.b32.xlu0 %v388, 112
    %v1394 = vpop.permute.xlu0 %1393
    %v1397 = vsel %vm398, %v1391, 0
    %1399 = vmatprep.subr.mxu0 0.0
    %1400 = vmatpush1.msra.mxu0 %v1394
    %1401 = vmatprep.subr.mxu0 0.0
    %1402 = vmatpush1.msra.mxu0 0.0
    %1403 = vmatprep.subr.mxu0 0.0
    %1404 = vmatpush1.msra.mxu0 0.0
    %1405 = vmatprep.subr.mxu0 0.0
    %1406 = vmatpush1.msra.mxu0 0.0
    %1407 = vmatprep.subr.mxu0 0.0
    %1408 = vmatpush1.msra.mxu0 0.0
    %1409 = vmatprep.subr.mxu0 0.0
    %1410 = vmatpush1.msra.mxu0 0.0
    %1411 = vmatprep.subr.mxu0 0.0
    %1412 = vmatpush1.msra.mxu0 0.0
    %1413 = vmatprep.subr.mxu0 0.0
    %1414 = vmatpush1.msra.mxu0 0.0
    %1415 = vmatprep.subr.mxu0 0.0
    %1416 = vmatpush1.msra.mxu0 0.0
    %1417 = vmatprep.subr.mxu0 0.0
    %1418 = vmatpush1.msra.mxu0 0.0
    %1419 = vmatprep.subr.mxu0 0.0
    %1420 = vmatpush1.msra.mxu0 0.0
    %1421 = vmatprep.subr.mxu0 0.0
    %1422 = vmatpush1.msra.mxu0 0.0
    %1423 = vmatprep.subr.mxu0 0.0
    %1424 = vmatpush1.msra.mxu0 0.0
    %1425 = vmatprep.subr.mxu0 0.0
    %1426 = vmatpush1.msra.mxu0 0.0
    %1427 = vmatprep.subr.mxu0 0.0
    %1428 = vmatpush1.msra.mxu0 0.0
    %1429 = vmatprep.subr.mxu0 0.0
    %1430 = vmatpush1.msra.mxu0 0.0
    %1431 = vmatprep.subr.mxu0 0.0
    %1432 = vmatpush1.msra.mxu0 0.0
    %1433 = vmatprep.subr.mxu0 0.0
    %1434 = vmatpush1.msra.mxu0 0.0
    %1435 = vmatprep.subr.mxu0 0.0
    %1436 = vmatpush1.msra.mxu0 0.0
    %1437 = vmatprep.subr.mxu0 0.0
    %1438 = vmatpush1.msra.mxu0 0.0
    %1439 = vmatprep.subr.mxu0 0.0
    %1440 = vmatpush1.msra.mxu0 0.0
    %1441 = vmatprep.subr.mxu0 0.0
    %1442 = vmatpush1.msra.mxu0 0.0
    %1443 = vmatprep.subr.mxu0 0.0
    %1444 = vmatpush1.msra.mxu0 0.0
    %1445 = vmatprep.subr.mxu0 0.0
    %1446 = vmatpush1.msra.mxu0 0.0
    %1447 = vmatprep.subr.mxu0 0.0
    %1448 = vmatpush1.msra.mxu0 0.0
    %1449 = vmatprep.subr.mxu0 0.0
    %1450 = vmatpush1.msra.mxu0 0.0
    %1451 = vmatprep.subr.mxu0 0.0
    %1452 = vmatpush1.msra.mxu0 0.0
    %1453 = vmatprep.subr.mxu0 0.0
    %1454 = vmatpush1.msra.mxu0 0.0
    %1455 = vmatprep.subr.mxu0 0.0
    %1456 = vmatpush1.msra.mxu0 0.0
    %1457 = vmatprep.subr.mxu0 0.0
    %1458 = vmatpush1.msra.mxu0 0.0
    %1459 = vmatprep.subr.mxu0 0.0
    %1460 = vmatpush1.msra.mxu0 0.0
    %1461 = vmatprep.subr.mxu0 0.0
    %1462 = vmatpush1.msra.mxu0 0.0
    %1463 = vmatprep.mubr.f32.mxu0 0.0
    %1464 = vmatmul.mubr.f32.gmra.mrb[0].mxu0 %v1397
    %v1465 = vpop.f32.mrb[0].mxu0
    %v1466 = vadd.f32 0.0, %v1465
    %v1467 = vpop.f32.mrb[0].mxu0
    %1468 = vdwg.mxu0
    %1469 = vrot.lane.b32.xlu0 %v393, 112
    %v1470 = vpop.permute.xlu0 %1469
    %v1473 = vsel %vm398, %v1392, 0
    %1475 = vmatprep.subr.mxu0 0.0
    %1476 = vmatpush1.msra.mxu0 %v1470
    %1477 = vmatprep.subr.mxu0 0.0
    %1478 = vmatpush1.msra.mxu0 0.0
    %1479 = vmatprep.subr.mxu0 0.0
    %1480 = vmatpush1.msra.mxu0 0.0
    %1481 = vmatprep.subr.mxu0 0.0
    %1482 = vmatpush1.msra.mxu0 0.0
    %1483 = vmatprep.subr.mxu0 0.0
    %1484 = vmatpush1.msra.mxu0 0.0
    %1485 = vmatprep.subr.mxu0 0.0
    %1486 = vmatpush1.msra.mxu0 0.0
    %1487 = vmatprep.subr.mxu0 0.0
    %1488 = vmatpush1.msra.mxu0 0.0
    %1489 = vmatprep.subr.mxu0 0.0
    %1490 = vmatpush1.msra.mxu0 0.0
    %1491 = vmatprep.subr.mxu0 0.0
    %1492 = vmatpush1.msra.mxu0 0.0
    %1493 = vmatprep.subr.mxu0 0.0
    %1494 = vmatpush1.msra.mxu0 0.0
    %1495 = vmatprep.subr.mxu0 0.0
    %1496 = vmatpush1.msra.mxu0 0.0
    %1497 = vmatprep.subr.mxu0 0.0
    %1498 = vmatpush1.msra.mxu0 0.0
    %1499 = vmatprep.subr.mxu0 0.0
    %1500 = vmatpush1.msra.mxu0 0.0
    %1501 = vmatprep.subr.mxu0 0.0
    %1502 = vmatpush1.msra.mxu0 0.0
    %1503 = vmatprep.subr.mxu0 0.0
    %1504 = vmatpush1.msra.mxu0 0.0
    %1505 = vmatprep.subr.mxu0 0.0
    %1506 = vmatpush1.msra.mxu0 0.0
    %1507 = vmatprep.subr.mxu0 0.0
    %1508 = vmatpush1.msra.mxu0 0.0
    %1509 = vmatprep.subr.mxu0 0.0
    %1510 = vmatpush1.msra.mxu0 0.0
    %1511 = vmatprep.subr.mxu0 0.0
    %1512 = vmatpush1.msra.mxu0 0.0
    %1513 = vmatprep.subr.mxu0 0.0
    %1514 = vmatpush1.msra.mxu0 0.0
    %1515 = vmatprep.subr.mxu0 0.0
    %1516 = vmatpush1.msra.mxu0 0.0
    %1517 = vmatprep.subr.mxu0 0.0
    %1518 = vmatpush1.msra.mxu0 0.0
    %1519 = vmatprep.subr.mxu0 0.0
    %1520 = vmatpush1.msra.mxu0 0.0
    %1521 = vmatprep.subr.mxu0 0.0
    %1522 = vmatpush1.msra.mxu0 0.0
    %1523 = vmatprep.subr.mxu0 0.0
    %1524 = vmatpush1.msra.mxu0 0.0
    %1525 = vmatprep.subr.mxu0 0.0
    %1526 = vmatpush1.msra.mxu0 0.0
    %1527 = vmatprep.subr.mxu0 0.0
    %1528 = vmatpush1.msra.mxu0 0.0
    %1529 = vmatprep.subr.mxu0 0.0
    %1530 = vmatpush1.msra.mxu0 0.0
    %1531 = vmatprep.subr.mxu0 0.0
    %1532 = vmatpush1.msra.mxu0 0.0
    %1533 = vmatprep.subr.mxu0 0.0
    %1534 = vmatpush1.msra.mxu0 0.0
    %1535 = vmatprep.subr.mxu0 0.0
    %1536 = vmatpush1.msra.mxu0 0.0
    %1537 = vmatprep.subr.mxu0 0.0
    %1538 = vmatpush1.msra.mxu0 0.0
    %1539 = vmatprep.mubr.f32.mxu0 0.0
    %1540 = vmatmul.mubr.f32.gmra.mrb[0].mxu0 %v1473
    %v1541 = vpop.f32.mrb[0].mxu0
    %v1542 = vadd.f32 0.0, %v1541
    %v1543 = vpop.f32.mrb[0].mxu0
    %1544 = vdwg.mxu0
    %v1545 = vld [vmem:[#allocation7 + $0x10] sm:$0xff]
    %v1547 = vsel %vm398, %v1466, 0
    %v1550 = vsel %vm398, %v1542, 0
    %1552 = vmatprep.subr.mxu0 0.0
    %1553 = vmatpush1.msra.mxu0 %v1545
    %1554 = vmatprep.subr.mxu0 0.0
    %1555 = vmatpush1.msra.mxu0 0.0
    %1556 = vmatprep.subr.mxu0 0.0
    %1557 = vmatpush1.msra.mxu0 0.0
    %1558 = vmatprep.subr.mxu0 0.0
    %1559 = vmatpush1.msra.mxu0 0.0
    %1560 = vmatprep.subr.mxu0 0.0
    %1561 = vmatpush1.msra.mxu0 0.0
    %1562 = vmatprep.subr.mxu0 0.0
    %1563 = vmatpush1.msra.mxu0 0.0
    %1564 = vmatprep.subr.mxu0 0.0
    %1565 = vmatpush1.msra.mxu0 0.0
    %1566 = vmatprep.subr.mxu0 0.0
    %1567 = vmatpush1.msra.mxu0 0.0
    %1568 = vmatprep.subr.mxu0 0.0
    %1569 = vmatpush1.msra.mxu0 0.0
    %1570 = vmatprep.subr.mxu0 0.0
    %1571 = vmatpush1.msra.mxu0 0.0
    %1572 = vmatprep.subr.mxu0 0.0
    %1573 = vmatpush1.msra.mxu0 0.0
    %1574 = vmatprep.subr.mxu0 0.0
    %1575 = vmatpush1.msra.mxu0 0.0
    %1576 = vmatprep.subr.mxu0 0.0
    %1577 = vmatpush1.msra.mxu0 0.0
    %1578 = vmatprep.subr.mxu0 0.0
    %1579 = vmatpush1.msra.mxu0 0.0
    %1580 = vmatprep.subr.mxu0 0.0
    %1581 = vmatpush1.msra.mxu0 0.0
    %1582 = vmatprep.subr.mxu0 0.0
    %1583 = vmatpush1.msra.mxu0 0.0
    %1584 = vmatprep.subr.mxu0 0.0
    %1585 = vmatpush1.msra.mxu0 0.0
    %1586 = vmatprep.subr.mxu0 0.0
    %1587 = vmatpush1.msra.mxu0 0.0
    %1588 = vmatprep.subr.mxu0 0.0
    %1589 = vmatpush1.msra.mxu0 0.0
    %1590 = vmatprep.subr.mxu0 0.0
    %1591 = vmatpush1.msra.mxu0 0.0
    %1592 = vmatprep.subr.mxu0 0.0
    %1593 = vmatpush1.msra.mxu0 0.0
    %1594 = vmatprep.subr.mxu0 0.0
    %1595 = vmatpush1.msra.mxu0 0.0
    %1596 = vmatprep.subr.mxu0 0.0
    %1597 = vmatpush1.msra.mxu0 0.0
    %1598 = vmatprep.subr.mxu0 0.0
    %1599 = vmatpush1.msra.mxu0 0.0
    %1600 = vmatprep.subr.mxu0 0.0
    %1601 = vmatpush1.msra.mxu0 0.0
    %1602 = vmatprep.subr.mxu0 0.0
    %1603 = vmatpush1.msra.mxu0 0.0
    %1604 = vmatprep.subr.mxu0 0.0
    %1605 = vmatpush1.msra.mxu0 0.0
    %1606 = vmatprep.subr.mxu0 0.0
    %1607 = vmatpush1.msra.mxu0 0.0
    %1608 = vmatprep.subr.mxu0 0.0
    %1609 = vmatpush1.msra.mxu0 0.0
    %1610 = vmatprep.subr.mxu0 0.0
    %1611 = vmatpush1.msra.mxu0 0.0
    %1612 = vmatprep.subr.mxu0 0.0
    %1613 = vmatpush1.msra.mxu0 0.0
    %1614 = vmatprep.subr.mxu0 0.0
    %1615 = vmatpush1.msra.mxu0 0.0
    %1616 = vmatprep.mubr.f32.mxu0 0.0
    %1617 = vmatmul.mubr.f32.gmra.mrb[0].mxu0 %v1547
    %v1618 = vpop.f32.mrb[0].mxu0
    %v1619 = vadd.f32 0.0, %v1618
    %v1620 = vpop.f32.mrb[0].mxu0
    %1621 = vmatprep.mubr.f32.mxu0 0.0
    %1622 = vmatmul.mubr.f32.gmra.mrb[0].mxu0 %v1550
    %v1623 = vpop.f32.mrb[0].mxu0
    %v1624 = vadd.f32 0.0, %v1623
    %v1625 = vpop.f32.mrb[0].mxu0
    %1626 = vdwg.mxu0
    %v1627 = vadd.f32 %v1207, %v1619
    %v1628 = vadd.f32 %v1212, %v1624
    %1629 = vrot.lane.b32.xlu0 %v396, 104
    %v1630 = vpop.permute.xlu0 %1629
    %1631 = vrot.lane.b32.xlu0 %v302, 104
    %v1632 = vpop.permute.xlu0 %1631
    %v1633 = vsel %vm398, %v1630, 0
    %v1635 = vsel %vm398, %v1632, 0
    %1637 = vmatprep.subr.mxu0 0.0
    %1638 = vmatpush1.xpose.msra.mxu0 %v1635
    %1639 = vmatprep.subr.mxu0 0.0
    %1640 = vmatpush1.xpose.msra.mxu0 0.0
    %1641 = vmatprep.subr.mxu0 0.0
    %1642 = vmatpush1.xpose.msra.mxu0 0.0
    %1643 = vmatprep.subr.mxu0 0.0
    %1644 = vmatpush1.xpose.msra.mxu0 0.0
    %1645 = vmatprep.subr.mxu0 0.0
    %1646 = vmatpush1.xpose.msra.mxu0 0.0
    %1647 = vmatprep.subr.mxu0 0.0
    %1648 = vmatpush1.xpose.msra.mxu0 0.0
    %1649 = vmatprep.subr.mxu0 0.0
    %1650 = vmatpush1.xpose.msra.mxu0 0.0
    %1651 = vmatprep.subr.mxu0 0.0
    %1652 = vmatpush1.xpose.msra.mxu0 0.0
    %1653 = vmatprep.subr.mxu0 0.0
    %1654 = vmatpush1.xpose.msra.mxu0 0.0
    %1655 = vmatprep.subr.mxu0 0.0
    %1656 = vmatpush1.xpose.msra.mxu0 0.0
    %1657 = vmatprep.subr.mxu0 0.0
    %1658 = vmatpush1.xpose.msra.mxu0 0.0
    %1659 = vmatprep.subr.mxu0 0.0
    %1660 = vmatpush1.xpose.msra.mxu0 0.0
    %1661 = vmatprep.subr.mxu0 0.0
    %1662 = vmatpush1.xpose.msra.mxu0 0.0
    %1663 = vmatprep.subr.mxu0 0.0
    %1664 = vmatpush1.xpose.msra.mxu0 0.0
    %1665 = vmatprep.subr.mxu0 0.0
    %1666 = vmatpush1.xpose.msra.mxu0 0.0
    %1667 = vmatprep.subr.mxu0 0.0
    %1668 = vmatpush1.xpose.msra.mxu0 0.0
    %1669 = vmatprep.subr.mxu0 0.0
    %1670 = vmatpush1.xpose.msra.mxu0 0.0
    %1671 = vmatprep.subr.mxu0 0.0
    %1672 = vmatpush1.xpose.msra.mxu0 0.0
    %1673 = vmatprep.subr.mxu0 0.0
    %1674 = vmatpush1.xpose.msra.mxu0 0.0
    %1675 = vmatprep.subr.mxu0 0.0
    %1676 = vmatpush1.xpose.msra.mxu0 0.0
    %1677 = vmatprep.subr.mxu0 0.0
    %1678 = vmatpush1.xpose.msra.mxu0 0.0
    %1679 = vmatprep.subr.mxu0 0.0
    %1680 = vmatpush1.xpose.msra.mxu0 0.0
    %1681 = vmatprep.subr.mxu0 0.0
    %1682 = vmatpush1.xpose.msra.mxu0 0.0
    %1683 = vmatprep.subr.mxu0 0.0
    %1684 = vmatpush1.xpose.msra.mxu0 0.0
    %1685 = vmatprep.subr.mxu0 0.0
    %1686 = vmatpush1.xpose.msra.mxu0 0.0
    %1687 = vmatprep.subr.mxu0 0.0
    %1688 = vmatpush1.xpose.msra.mxu0 0.0
    %1689 = vmatprep.subr.mxu0 0.0
    %1690 = vmatpush1.xpose.msra.mxu0 0.0
    %1691 = vmatprep.subr.mxu0 0.0
    %1692 = vmatpush1.xpose.msra.mxu0 0.0
    %1693 = vmatprep.subr.mxu0 0.0
    %1694 = vmatpush1.xpose.msra.mxu0 0.0
    %1695 = vmatprep.subr.mxu0 0.0
    %1696 = vmatpush1.xpose.msra.mxu0 0.0
    %1697 = vmatprep.subr.mxu0 0.0
    %1698 = vmatpush1.xpose.msra.mxu0 0.0
    %1699 = vmatprep.subr.mxu0 0.0
    %1700 = vmatpush1.xpose.msra.mxu0 0.0
    %1701 = vmatprep.mubr.f32.mxu0 0.0
    %1702 = vmatmul.mubr.f32.gmra.mrb[0].mxu0 %v1633
    %v1703 = vpop.f32.mrb[0].mxu0
    %v1704 = vadd.f32 0.0, %v1703
    %v1705 = vpop.f32.mrb[0].mxu0
    %1706 = vdwg.mxu0
    %1707 = vrot.lane.b32.xlu0 %v397, 104
    %v1708 = vpop.permute.xlu0 %1707
    %1709 = vrot.lane.b32.xlu0 %v307, 104
    %v1710 = vpop.permute.xlu0 %1709
    %v1711 = vsel %vm398, %v1708, 0
    %v1713 = vsel %vm398, %v1710, 0
    %1715 = vmatprep.subr.mxu0 0.0
    %1716 = vmatpush1.xpose.msra.mxu0 %v1713
    %1717 = vmatprep.subr.mxu0 0.0
    %1718 = vmatpush1.xpose.msra.mxu0 0.0
    %1719 = vmatprep.subr.mxu0 0.0
    %1720 = vmatpush1.xpose.msra.mxu0 0.0
    %1721 = vmatprep.subr.mxu0 0.0
    %1722 = vmatpush1.xpose.msra.mxu0 0.0
    %1723 = vmatprep.subr.mxu0 0.0
    %1724 = vmatpush1.xpose.msra.mxu0 0.0
    %1725 = vmatprep.subr.mxu0 0.0
    %1726 = vmatpush1.xpose.msra.mxu0 0.0
    %1727 = vmatprep.subr.mxu0 0.0
    %1728 = vmatpush1.xpose.msra.mxu0 0.0
    %1729 = vmatprep.subr.mxu0 0.0
    %1730 = vmatpush1.xpose.msra.mxu0 0.0
    %1731 = vmatprep.subr.mxu0 0.0
    %1732 = vmatpush1.xpose.msra.mxu0 0.0
    %1733 = vmatprep.subr.mxu0 0.0
    %1734 = vmatpush1.xpose.msra.mxu0 0.0
    %1735 = vmatprep.subr.mxu0 0.0
    %1736 = vmatpush1.xpose.msra.mxu0 0.0
    %1737 = vmatprep.subr.mxu0 0.0
    %1738 = vmatpush1.xpose.msra.mxu0 0.0
    %1739 = vmatprep.subr.mxu0 0.0
    %1740 = vmatpush1.xpose.msra.mxu0 0.0
    %1741 = vmatprep.subr.mxu0 0.0
    %1742 = vmatpush1.xpose.msra.mxu0 0.0
    %1743 = vmatprep.subr.mxu0 0.0
    %1744 = vmatpush1.xpose.msra.mxu0 0.0
    %1745 = vmatprep.subr.mxu0 0.0
    %1746 = vmatpush1.xpose.msra.mxu0 0.0
    %1747 = vmatprep.subr.mxu0 0.0
    %1748 = vmatpush1.xpose.msra.mxu0 0.0
    %1749 = vmatprep.subr.mxu0 0.0
    %1750 = vmatpush1.xpose.msra.mxu0 0.0
    %1751 = vmatprep.subr.mxu0 0.0
    %1752 = vmatpush1.xpose.msra.mxu0 0.0
    %1753 = vmatprep.subr.mxu0 0.0
    %1754 = vmatpush1.xpose.msra.mxu0 0.0
    %1755 = vmatprep.subr.mxu0 0.0
    %1756 = vmatpush1.xpose.msra.mxu0 0.0
    %1757 = vmatprep.subr.mxu0 0.0
    %1758 = vmatpush1.xpose.msra.mxu0 0.0
    %1759 = vmatprep.subr.mxu0 0.0
    %1760 = vmatpush1.xpose.msra.mxu0 0.0
    %1761 = vmatprep.subr.mxu0 0.0
    %1762 = vmatpush1.xpose.msra.mxu0 0.0
    %1763 = vmatprep.subr.mxu0 0.0
    %1764 = vmatpush1.xpose.msra.mxu0 0.0
    %1765 = vmatprep.subr.mxu0 0.0
    %1766 = vmatpush1.xpose.msra.mxu0 0.0
    %1767 = vmatprep.subr.mxu0 0.0
    %1768 = vmatpush1.xpose.msra.mxu0 0.0
    %1769 = vmatprep.subr.mxu0 0.0
    %1770 = vmatpush1.xpose.msra.mxu0 0.0
    %1771 = vmatprep.subr.mxu0 0.0
    %1772 = vmatpush1.xpose.msra.mxu0 0.0
    %1773 = vmatprep.subr.mxu0 0.0
    %1774 = vmatpush1.xpose.msra.mxu0 0.0
    %1775 = vmatprep.subr.mxu0 0.0
    %1776 = vmatpush1.xpose.msra.mxu0 0.0
    %1777 = vmatprep.subr.mxu0 0.0
    %1778 = vmatpush1.xpose.msra.mxu0 0.0
    %1779 = vmatprep.mubr.f32.mxu0 0.0
    %1780 = vmatmul.mubr.f32.gmra.mrb[0].mxu0 %v1711
    %v1781 = vpop.f32.mrb[0].mxu0
    %v1782 = vadd.f32 0.0, %v1781
    %v1783 = vpop.f32.mrb[0].mxu0
    %1784 = vdwg.mxu0
    %v1785 = vsel %vm398, %v1704, -inf
    %1786 = vmax.xlane.f32.xlu0 %v1785
    %v1787 = vpop.xlane.xlu0 %1786
    %v1788 = vsel %vm398, %v1782, -inf
    %1789 = vmax.xlane.f32.xlu0 %v1788
    %v1790 = vpop.xlane.xlu0 %1789
    %v1791 = vsub.f32 %v1704, %v1787
    %v1792 = vsub.f32 %v1782, %v1790
    %v1793 = vmul.f32 %v1791, 1.442695
    %v1794 = vpow.pop %v1793
    %v1795 = vmul.f32 %v1792, 1.442695
    %v1796 = vpow.pop %v1795
    %v1797 = vsel %vm398, %v1794, 0.0
    %1798 = vadd.xlane.f32.xlu0 %v1797
    %v1799 = vpop.xlane.xlu0 %1798
    %v1800 = vsel %vm398, %v1796, 0.0
    %1801 = vadd.xlane.f32.xlu0 %v1800
    %v1802 = vpop.xlane.xlu0 %1801
    %v1803 = vrcp.pop %v1799
    %v1804 = vrcp.pop %v1802
    %v1805 = vmul.f32 %v1794, %v1803
    %v1806 = vmul.f32 %v1796, %v1804
    %1807 = vrot.lane.b32.xlu0 %v388, 104
    %v1808 = vpop.permute.xlu0 %1807
    %v1811 = vsel %vm398, %v1805, 0
    %1813 = vmatprep.subr.mxu0 0.0
    %1814 = vmatpush1.msra.mxu0 %v1808
    %1815 = vmatprep.subr.mxu0 0.0
    %1816 = vmatpush1.msra.mxu0 0.0
    %1817 = vmatprep.subr.mxu0 0.0
    %1818 = vmatpush1.msra.mxu0 0.0
    %1819 = vmatprep.subr.mxu0 0.0
    %1820 = vmatpush1.msra.mxu0 0.0
    %1821 = vmatprep.subr.mxu0 0.0
    %1822 = vmatpush1.msra.mxu0 0.0
    %1823 = vmatprep.subr.mxu0 0.0
    %1824 = vmatpush1.msra.mxu0 0.0
    %1825 = vmatprep.subr.mxu0 0.0
    %1826 = vmatpush1.msra.mxu0 0.0
    %1827 = vmatprep.subr.mxu0 0.0
    %1828 = vmatpush1.msra.mxu0 0.0
    %1829 = vmatprep.subr.mxu0 0.0
    %1830 = vmatpush1.msra.mxu0 0.0
    %1831 = vmatprep.subr.mxu0 0.0
    %1832 = vmatpush1.msra.mxu0 0.0
    %1833 = vmatprep.subr.mxu0 0.0
    %1834 = vmatpush1.msra.mxu0 0.0
    %1835 = vmatprep.subr.mxu0 0.0
    %1836 = vmatpush1.msra.mxu0 0.0
    %1837 = vmatprep.subr.mxu0 0.0
    %1838 = vmatpush1.msra.mxu0 0.0
    %1839 = vmatprep.subr.mxu0 0.0
    %1840 = vmatpush1.msra.mxu0 0.0
    %1841 = vmatprep.subr.mxu0 0.0
    %1842 = vmatpush1.msra.mxu0 0.0
    %1843 = vmatprep.subr.mxu0 0.0
    %1844 = vmatpush1.msra.mxu0 0.0
    %1845 = vmatprep.subr.mxu0 0.0
    %1846 = vmatpush1.msra.mxu0 0.0
    %1847 = vmatprep.subr.mxu0 0.0
    %1848 = vmatpush1.msra.mxu0 0.0
    %1849 = vmatprep.subr.mxu0 0.0
    %1850 = vmatpush1.msra.mxu0 0.0
    %1851 = vmatprep.subr.mxu0 0.0
    %1852 = vmatpush1.msra.mxu0 0.0
    %1853 = vmatprep.subr.mxu0 0.0
    %1854 = vmatpush1.msra.mxu0 0.0
    %1855 = vmatprep.subr.mxu0 0.0
    %1856 = vmatpush1.msra.mxu0 0.0
    %1857 = vmatprep.subr.mxu0 0.0
    %1858 = vmatpush1.msra.mxu0 0.0
    %1859 = vmatprep.subr.mxu0 0.0
    %1860 = vmatpush1.msra.mxu0 0.0
    %1861 = vmatprep.subr.mxu0 0.0
    %1862 = vmatpush1.msra.mxu0 0.0
    %1863 = vmatprep.subr.mxu0 0.0
    %1864 = vmatpush1.msra.mxu0 0.0
    %1865 = vmatprep.subr.mxu0 0.0
    %1866 = vmatpush1.msra.mxu0 0.0
    %1867 = vmatprep.subr.mxu0 0.0
    %1868 = vmatpush1.msra.mxu0 0.0
    %1869 = vmatprep.subr.mxu0 0.0
    %1870 = vmatpush1.msra.mxu0 0.0
    %1871 = vmatprep.subr.mxu0 0.0
    %1872 = vmatpush1.msra.mxu0 0.0
    %1873 = vmatprep.subr.mxu0 0.0
    %1874 = vmatpush1.msra.mxu0 0.0
    %1875 = vmatprep.subr.mxu0 0.0
    %1876 = vmatpush1.msra.mxu0 0.0
    %1877 = vmatprep.mubr.f32.mxu0 0.0
    %1878 = vmatmul.mubr.f32.gmra.mrb[0].mxu0 %v1811
    %v1879 = vpop.f32.mrb[0].mxu0
    %v1880 = vadd.f32 0.0, %v1879
    %v1881 = vpop.f32.mrb[0].mxu0
    %1882 = vdwg.mxu0
    %1883 = vrot.lane.b32.xlu0 %v393, 104
    %v1884 = vpop.permute.xlu0 %1883
    %v1887 = vsel %vm398, %v1806, 0
    %1889 = vmatprep.subr.mxu0 0.0
    %1890 = vmatpush1.msra.mxu0 %v1884
    %1891 = vmatprep.subr.mxu0 0.0
    %1892 = vmatpush1.msra.mxu0 0.0
    %1893 = vmatprep.subr.mxu0 0.0
    %1894 = vmatpush1.msra.mxu0 0.0
    %1895 = vmatprep.subr.mxu0 0.0
    %1896 = vmatpush1.msra.mxu0 0.0
    %1897 = vmatprep.subr.mxu0 0.0
    %1898 = vmatpush1.msra.mxu0 0.0
    %1899 = vmatprep.subr.mxu0 0.0
    %1900 = vmatpush1.msra.mxu0 0.0
    %1901 = vmatprep.subr.mxu0 0.0
    %1902 = vmatpush1.msra.mxu0 0.0
    %1903 = vmatprep.subr.mxu0 0.0
    %1904 = vmatpush1.msra.mxu0 0.0
    %1905 = vmatprep.subr.mxu0 0.0
    %1906 = vmatpush1.msra.mxu0 0.0
    %1907 = vmatprep.subr.mxu0 0.0
    %1908 = vmatpush1.msra.mxu0 0.0
    %1909 = vmatprep.subr.mxu0 0.0
    %1910 = vmatpush1.msra.mxu0 0.0
    %1911 = vmatprep.subr.mxu0 0.0
    %1912 = vmatpush1.msra.mxu0 0.0
    %1913 = vmatprep.subr.mxu0 0.0
    %1914 = vmatpush1.msra.mxu0 0.0
    %1915 = vmatprep.subr.mxu0 0.0
    %1916 = vmatpush1.msra.mxu0 0.0
    %1917 = vmatprep.subr.mxu0 0.0
    %1918 = vmatpush1.msra.mxu0 0.0
    %1919 = vmatprep.subr.mxu0 0.0
    %1920 = vmatpush1.msra.mxu0 0.0
    %1921 = vmatprep.subr.mxu0 0.0
    %1922 = vmatpush1.msra.mxu0 0.0
    %1923 = vmatprep.subr.mxu0 0.0
    %1924 = vmatpush1.msra.mxu0 0.0
    %1925 = vmatprep.subr.mxu0 0.0
    %1926 = vmatpush1.msra.mxu0 0.0
    %1927 = vmatprep.subr.mxu0 0.0
    %1928 = vmatpush1.msra.mxu0 0.0
    %1929 = vmatprep.subr.mxu0 0.0
    %1930 = vmatpush1.msra.mxu0 0.0
    %1931 = vmatprep.subr.mxu0 0.0
    %1932 = vmatpush1.msra.mxu0 0.0
    %1933 = vmatprep.subr.mxu0 0.0
    %1934 = vmatpush1.msra.mxu0 0.0
    %1935 = vmatprep.subr.mxu0 0.0
    %1936 = vmatpush1.msra.mxu0 0.0
    %1937 = vmatprep.subr.mxu0 0.0
    %1938 = vmatpush1.msra.mxu0 0.0
    %1939 = vmatprep.subr.mxu0 0.0
    %1940 = vmatpush1.msra.mxu0 0.0
    %1941 = vmatprep.subr.mxu0 0.0
    %1942 = vmatpush1.msra.mxu0 0.0
    %1943 = vmatprep.subr.mxu0 0.0
    %1944 = vmatpush1.msra.mxu0 0.0
    %1945 = vmatprep.subr.mxu0 0.0
    %1946 = vmatpush1.msra.mxu0 0.0
    %1947 = vmatprep.subr.mxu0 0.0
    %1948 = vmatpush1.msra.mxu0 0.0
    %1949 = vmatprep.subr.mxu0 0.0
    %1950 = vmatpush1.msra.mxu0 0.0
    %1951 = vmatprep.subr.mxu0 0.0
    %1952 = vmatpush1.msra.mxu0 0.0
    %1953 = vmatprep.mubr.f32.mxu0 0.0
    %1954 = vmatmul.mubr.f32.gmra.mrb[0].mxu0 %v1887
    %v1955 = vpop.f32.mrb[0].mxu0
    %v1956 = vadd.f32 0.0, %v1955
    %v1957 = vpop.f32.mrb[0].mxu0
    %1958 = vdwg.mxu0
    %v1959 = vld [vmem:[#allocation7 + $0x18] sm:$0xff]
    %v1961 = vsel %vm398, %v1880, 0
    %v1964 = vsel %vm398, %v1956, 0
    %1966 = vmatprep.subr.mxu0 0.0
    %1967 = vmatpush1.msra.mxu0 %v1959
    %1968 = vmatprep.subr.mxu0 0.0
    %1969 = vmatpush1.msra.mxu0 0.0
    %1970 = vmatprep.subr.mxu0 0.0
    %1971 = vmatpush1.msra.mxu0 0.0
    %1972 = vmatprep.subr.mxu0 0.0
    %1973 = vmatpush1.msra.mxu0 0.0
    %1974 = vmatprep.subr.mxu0 0.0
    %1975 = vmatpush1.msra.mxu0 0.0
    %1976 = vmatprep.subr.mxu0 0.0
    %1977 = vmatpush1.msra.mxu0 0.0
    %1978 = vmatprep.subr.mxu0 0.0
    %1979 = vmatpush1.msra.mxu0 0.0
    %1980 = vmatprep.subr.mxu0 0.0
    %1981 = vmatpush1.msra.mxu0 0.0
    %1982 = vmatprep.subr.mxu0 0.0
    %1983 = vmatpush1.msra.mxu0 0.0
    %1984 = vmatprep.subr.mxu0 0.0
    %1985 = vmatpush1.msra.mxu0 0.0
    %1986 = vmatprep.subr.mxu0 0.0
    %1987 = vmatpush1.msra.mxu0 0.0
    %1988 = vmatprep.subr.mxu0 0.0
    %1989 = vmatpush1.msra.mxu0 0.0
    %1990 = vmatprep.subr.mxu0 0.0
    %1991 = vmatpush1.msra.mxu0 0.0
    %1992 = vmatprep.subr.mxu0 0.0
    %1993 = vmatpush1.msra.mxu0 0.0
    %1994 = vmatprep.subr.mxu0 0.0
    %1995 = vmatpush1.msra.mxu0 0.0
    %1996 = vmatprep.subr.mxu0 0.0
    %1997 = vmatpush1.msra.mxu0 0.0
    %1998 = vmatprep.subr.mxu0 0.0
    %1999 = vmatpush1.msra.mxu0 0.0
    %2000 = vmatprep.subr.mxu0 0.0
    %2001 = vmatpush1.msra.mxu0 0.0
    %2002 = vmatprep.subr.mxu0 0.0
    %2003 = vmatpush1.msra.mxu0 0.0
    %2004 = vmatprep.subr.mxu0 0.0
    %2005 = vmatpush1.msra.mxu0 0.0
    %2006 = vmatprep.subr.mxu0 0.0
    %2007 = vmatpush1.msra.mxu0 0.0
    %2008 = vmatprep.subr.mxu0 0.0
    %2009 = vmatpush1.msra.mxu0 0.0
    %2010 = vmatprep.subr.mxu0 0.0
    %2011 = vmatpush1.msra.mxu0 0.0
    %2012 = vmatprep.subr.mxu0 0.0
    %2013 = vmatpush1.msra.mxu0 0.0
    %2014 = vmatprep.subr.mxu0 0.0
    %2015 = vmatpush1.msra.mxu0 0.0
    %2016 = vmatprep.subr.mxu0 0.0
    %2017 = vmatpush1.msra.mxu0 0.0
    %2018 = vmatprep.subr.mxu0 0.0
    %2019 = vmatpush1.msra.mxu0 0.0
    %2020 = vmatprep.subr.mxu0 0.0
    %2021 = vmatpush1.msra.mxu0 0.0
    %2022 = vmatprep.subr.mxu0 0.0
    %2023 = vmatpush1.msra.mxu0 0.0
    %2024 = vmatprep.subr.mxu0 0.0
    %2025 = vmatpush1.msra.mxu0 0.0
    %2026 = vmatprep.subr.mxu0 0.0
    %2027 = vmatpush1.msra.mxu0 0.0
    %2028 = vmatprep.subr.mxu0 0.0
    %2029 = vmatpush1.msra.mxu0 0.0
    %2030 = vmatprep.mubr.f32.mxu0 0.0
    %2031 = vmatmul.mubr.f32.gmra.mrb[0].mxu0 %v1961
    %v2032 = vpop.f32.mrb[0].mxu0
    %v2033 = vadd.f32 0.0, %v2032
    %v2034 = vpop.f32.mrb[0].mxu0
    %2035 = vmatprep.mubr.f32.mxu0 0.0
    %2036 = vmatmul.mubr.f32.gmra.mrb[0].mxu0 %v1964
    %v2037 = vpop.f32.mrb[0].mxu0
    %v2038 = vadd.f32 0.0, %v2037
    %v2039 = vpop.f32.mrb[0].mxu0
    %2040 = vdwg.mxu0
    %v2041 = vadd.f32 %v1627, %v2033
    %v2042 = vadd.f32 %v1628, %v2038
    %v2043 = vld [vmem:[%s9] sm:$0x1]
    %v2045 = vlaneseq
    %v2046 = vshrl.u32 %v2045, 7
    %v2047 = vsub.s32 0, %v2046
    %v2048 = vrot.slane %v2043, %v2047
    %v2050 = vadd.f32 %v2041, %v2048
    %v2051 = vadd.f32 %v2042, %v2048
    %v2052 = vadd.f32 %v121, %v2050
    %v2053 = vadd.f32 %v122, %v2051
    %v2054 = vld [vmem:[%s14] sm:$0x1]
    %v2055 = vld [vmem:[%s15] sm:$0x1]
    %v2056 = vsel %vm136, %v2052, 0.0
    %2057 = vadd.xlane.f32.xlu0 %v2056
    %v2058 = vpop.xlane.xlu0 %2057
    %v2059 = vsel %vm136, %v2053, 0.0
    %2060 = vadd.xlane.f32.xlu0 %v2059
    %v2061 = vpop.xlane.xlu0 %2060
    %v2062 = vrcp.pop 32.0
    %v2063 = vmul.f32 %v2058, %v2062
    %v2064 = vmul.f32 %v2061, %v2062
    %v2065 = vsub.f32 %v2052, %v2063
    %v2066 = vsub.f32 %v2053, %v2064
    %v2067 = vmul.f32 %v2065, %v2065
    %v2068 = vmul.f32 %v2066, %v2066
    %v2069 = vsel %vm136, %v2067, 0.0
    %2070 = vadd.xlane.f32.xlu0 %v2069
    %v2071 = vpop.xlane.xlu0 %2070
    %v2072 = vsel %vm136, %v2068, 0.0
    %2073 = vadd.xlane.f32.xlu0 %v2072
    %v2074 = vpop.xlane.xlu0 %2073
    %v2075 = vmul.f32 %v2071, %v2062
    %v2076 = vmul.f32 %v2074, %v2062
    %v2077 = vadd.f32 %v2075, 1e-05
    %v2078 = vadd.f32 %v2076, 1e-05
    %v2079 = vrsqrt.pop %v2077
    %v2080 = vrsqrt.pop %v2078
    %v2081 = vmul.f32 %v2065, %v2079
    %v2082 = vmul.f32 %v2066, %v2080
    %v2084 = vlaneseq
    %v2085 = vshrl.u32 %v2084, 7
    %v2086 = vsub.s32 0, %v2085
    %v2087 = vrot.slane %v2054, %v2086
    %v2089 = vmul.f32 %v2081, %v2087
    %v2090 = vmul.f32 %v2082, %v2087
    %v2092 = vlaneseq
    %v2093 = vshrl.u32 %v2092, 7
    %v2094 = vsub.s32 0, %v2093
    %v2095 = vrot.slane %v2055, %v2094
    %v2097 = vadd.f32 %v2089, %v2095
    %v2098 = vadd.f32 %v2090, %v2095
    %v2099 = vld [vmem:[#allocation8] sm:$0xff]
    %v2100 = vld [vmem:[#allocation8 + $0x8] sm:$0xff]
    %v2101 = vld [vmem:[#allocation8 + $0x10] sm:$0xff]
    %v2102 = vld [vmem:[#allocation8 + $0x18] sm:$0xff]
    %v2103 = vld [vmem:[%s11] sm:$0x1]
    %v2105 = vlaneseq
    %v2106 = vshrl.u32 %v2105, 7
    %v2107 = vsub.s32 0, %v2106
    %v2108 = vrot.slane %v2103, %v2107
    %v2111 = vsel %vm136, %v2097, 0
    %v2114 = vsel %vm136, %v2098, 0
    %2116 = vmatprep.subr.mxu0 0.0
    %2117 = vmatpush1.msra.mxu0 %v2099
    %2118 = vmatprep.subr.mxu0 0.0
    %2119 = vmatpush1.msra.mxu0 %v2100
    %2120 = vmatprep.subr.mxu0 0.0
    %2121 = vmatpush1.msra.mxu0 %v2101
    %2122 = vmatprep.subr.mxu0 0.0
    %2123 = vmatpush1.msra.mxu0 %v2102
    %2124 = vmatprep.subr.mxu0 0.0
    %2125 = vmatpush1.msra.mxu0 0.0
    %2126 = vmatprep.subr.mxu0 0.0
    %2127 = vmatpush1.msra.mxu0 0.0
    %2128 = vmatprep.subr.mxu0 0.0
    %2129 = vmatpush1.msra.mxu0 0.0
    %2130 = vmatprep.subr.mxu0 0.0
    %2131 = vmatpush1.msra.mxu0 0.0
    %2132 = vmatprep.subr.mxu0 0.0
    %2133 = vmatpush1.msra.mxu0 0.0
    %2134 = vmatprep.subr.mxu0 0.0
    %2135 = vmatpush1.msra.mxu0 0.0
    %2136 = vmatprep.subr.mxu0 0.0
    %2137 = vmatpush1.msra.mxu0 0.0
    %2138 = vmatprep.subr.mxu0 0.0
    %2139 = vmatpush1.msra.mxu0 0.0
    %2140 = vmatprep.subr.mxu0 0.0
    %2141 = vmatpush1.msra.mxu0 0.0
    %2142 = vmatprep.subr.mxu0 0.0
    %2143 = vmatpush1.msra.mxu0 0.0
    %2144 = vmatprep.subr.mxu0 0.0
    %2145 = vmatpush1.msra.mxu0 0.0
    %2146 = vmatprep.subr.mxu0 0.0
    %2147 = vmatpush1.msra.mxu0 0.0
    %2148 = vmatprep.subr.mxu0 0.0
    %2149 = vmatpush1.msra.mxu0 0.0
    %2150 = vmatprep.subr.mxu0 0.0
    %2151 = vmatpush1.msra.mxu0 0.0
    %2152 = vmatprep.subr.mxu0 0.0
    %2153 = vmatpush1.msra.mxu0 0.0
    %2154 = vmatprep.subr.mxu0 0.0
    %2155 = vmatpush1.msra.mxu0 0.0
    %2156 = vmatprep.subr.mxu0 0.0
    %2157 = vmatpush1.msra.mxu0 0.0
    %2158 = vmatprep.subr.mxu0 0.0
    %2159 = vmatpush1.msra.mxu0 0.0
    %2160 = vmatprep.subr.mxu0 0.0
    %2161 = vmatpush1.msra.mxu0 0.0
    %2162 = vmatprep.subr.mxu0 0.0
    %2163 = vmatpush1.msra.mxu0 0.0
    %2164 = vmatprep.subr.mxu0 0.0
    %2165 = vmatpush1.msra.mxu0 0.0
    %2166 = vmatprep.subr.mxu0 0.0
    %2167 = vmatpush1.msra.mxu0 0.0
    %2168 = vmatprep.subr.mxu0 0.0
    %2169 = vmatpush1.msra.mxu0 0.0
    %2170 = vmatprep.subr.mxu0 0.0
    %2171 = vmatpush1.msra.mxu0 0.0
    %2172 = vmatprep.subr.mxu0 0.0
    %2173 = vmatpush1.msra.mxu0 0.0
    %2174 = vmatprep.subr.mxu0 0.0
    %2175 = vmatpush1.msra.mxu0 0.0
    %2176 = vmatprep.subr.mxu0 0.0
    %2177 = vmatpush1.msra.mxu0 0.0
    %2178 = vmatprep.subr.mxu0 0.0
    %2179 = vmatpush1.msra.mxu0 0.0
    %2180 = vmatprep.mubr.f32.mxu0 0.0
    %2181 = vmatmul.mubr.f32.gmra.mrb[0].mxu0 %v2111
    %v2182 = vpop.f32.mrb[0].mxu0
    %v2183 = vadd.f32 %v2108, %v2182
    %v2184 = vpop.f32.mrb[0].mxu0
    %2185 = vmatprep.mubr.f32.mxu0 0.0
    %2186 = vmatmul.mubr.f32.gmra.mrb[0].mxu0 %v2114
    %v2187 = vpop.f32.mrb[0].mxu0
    %v2188 = vadd.f32 %v2108, %v2187
    %v2189 = vpop.f32.mrb[0].mxu0
    %2190 = vdwg.mxu0
    %v2191 = vmax.f32 %v2183, 0.0
    %v2192 = vmax.f32 %v2188, 0.0
    %v2193 = vld [vmem:[%s12] sm:$0xff]
    %v2194 = vld [vmem:[%s12 + $0x8] sm:$0xff]
    %v2195 = vld [vmem:[%s12 + $0x10] sm:$0xff]
    %v2196 = vld [vmem:[%s12 + $0x18] sm:$0xff]
    %v2197 = vld [vmem:[%s12 + $0x20] sm:$0xff]
    %v2198 = vld [vmem:[%s12 + $0x28] sm:$0xff]
    %v2199 = vld [vmem:[%s12 + $0x30] sm:$0xff]
    %v2200 = vld [vmem:[%s12 + $0x38] sm:$0xff]
    %v2201 = vld [vmem:[%s13] sm:$0x1]
    %v2203 = vlaneseq
    %v2204 = vshrl.u32 %v2203, 7
    %v2205 = vsub.s32 0, %v2204
    %v2206 = vrot.slane %v2201, %v2205
    %vm2208 = vcmask 523264
    %v2210 = vsel %vm2208, %v2191, 0
    %v2213 = vsel %vm2208, %v2192, 0
    %2215 = vmatprep.subr.mxu0 0.0
    %2216 = vmatpush1.msra.mxu0 %v2193
    %2217 = vmatprep.subr.mxu0 0.0
    %2218 = vmatpush1.msra.mxu0 %v2194
    %2219 = vmatprep.subr.mxu0 0.0
    %2220 = vmatpush1.msra.mxu0 %v2195
    %2221 = vmatprep.subr.mxu0 0.0
    %2222 = vmatpush1.msra.mxu0 %v2196
    %2223 = vmatprep.subr.mxu0 0.0
    %2224 = vmatpush1.msra.mxu0 %v2197
    %2225 = vmatprep.subr.mxu0 0.0
    %2226 = vmatpush1.msra.mxu0 %v2198
    %2227 = vmatprep.subr.mxu0 0.0
    %2228 = vmatpush1.msra.mxu0 %v2199
    %2229 = vmatprep.subr.mxu0 0.0
    %2230 = vmatpush1.msra.mxu0 %v2200
    %2231 = vmatprep.subr.mxu0 0.0
    %2232 = vmatpush1.msra.mxu0 0.0
    %2233 = vmatprep.subr.mxu0 0.0
    %2234 = vmatpush1.msra.mxu0 0.0
    %2235 = vmatprep.subr.mxu0 0.0
    %2236 = vmatpush1.msra.mxu0 0.0
    %2237 = vmatprep.subr.mxu0 0.0
    %2238 = vmatpush1.msra.mxu0 0.0
    %2239 = vmatprep.subr.mxu0 0.0
    %2240 = vmatpush1.msra.mxu0 0.0
    %2241 = vmatprep.subr.mxu0 0.0
    %2242 = vmatpush1.msra.mxu0 0.0
    %2243 = vmatprep.subr.mxu0 0.0
    %2244 = vmatpush1.msra.mxu0 0.0
    %2245 = vmatprep.subr.mxu0 0.0
    %2246 = vmatpush1.msra.mxu0 0.0
    %2247 = vmatprep.subr.mxu0 0.0
    %2248 = vmatpush1.msra.mxu0 0.0
    %2249 = vmatprep.subr.mxu0 0.0
    %2250 = vmatpush1.msra.mxu0 0.0
    %2251 = vmatprep.subr.mxu0 0.0
    %2252 = vmatpush1.msra.mxu0 0.0
    %2253 = vmatprep.subr.mxu0 0.0
    %2254 = vmatpush1.msra.mxu0 0.0
    %2255 = vmatprep.subr.mxu0 0.0
    %2256 = vmatpush1.msra.mxu0 0.0
    %2257 = vmatprep.subr.mxu0 0.0
    %2258 = vmatpush1.msra.mxu0 0.0
    %2259 = vmatprep.subr.mxu0 0.0
    %2260 = vmatpush1.msra.mxu0 0.0
    %2261 = vmatprep.subr.mxu0 0.0
    %2262 = vmatpush1.msra.mxu0 0.0
    %2263 = vmatprep.subr.mxu0 0.0
    %2264 = vmatpush1.msra.mxu0 0.0
    %2265 = vmatprep.subr.mxu0 0.0
    %2266 = vmatpush1.msra.mxu0 0.0
    %2267 = vmatprep.subr.mxu0 0.0
    %2268 = vmatpush1.msra.mxu0 0.0
    %2269 = vmatprep.subr.mxu0 0.0
    %2270 = vmatpush1.msra.mxu0 0.0
    %2271 = vmatprep.subr.mxu0 0.0
    %2272 = vmatpush1.msra.mxu0 0.0
    %2273 = vmatprep.subr.mxu0 0.0
    %2274 = vmatpush1.msra.mxu0 0.0
    %2275 = vmatprep.subr.mxu0 0.0
    %2276 = vmatpush1.msra.mxu0 0.0
    %2277 = vmatprep.subr.mxu0 0.0
    %2278 = vmatpush1.msra.mxu0 0.0
    %2279 = vmatprep.mubr.f32.mxu0 0.0
    %2280 = vmatmul.mubr.f32.gmra.mrb[0].mxu0 %v2210
    %v2281 = vpop.f32.mrb[0].mxu0
    %v2282 = vadd.f32 %v2206, %v2281
    %v2283 = vpop.f32.mrb[0].mxu0
    %2284 = vmatprep.mubr.f32.mxu0 0.0
    %2285 = vmatmul.mubr.f32.gmra.mrb[0].mxu0 %v2213
    %v2286 = vpop.f32.mrb[0].mxu0
    %v2287 = vadd.f32 %v2206, %v2286
    %v2288 = vpop.f32.mrb[0].mxu0
    %2289 = vdwg.mxu0
    %v2290 = vadd.f32 %v2097, %v2282
    %v2291 = vadd.f32 %v2098, %v2287
    %v2292 = vld [vmem:[%s16] sm:$0x1]
    %v2293 = vld [vmem:[%s17] sm:$0x1]
    %v2294 = vsel %vm136, %v2290, 0.0
    %2295 = vadd.xlane.f32.xlu0 %v2294
    %v2296 = vpop.xlane.xlu0 %2295
    %v2297 = vsel %vm136, %v2291, 0.0
    %2298 = vadd.xlane.f32.xlu0 %v2297
    %v2299 = vpop.xlane.xlu0 %2298
    %v2300 = vmul.f32 %v2296, %v2062
    %v2301 = vmul.f32 %v2299, %v2062
    %v2302 = vsub.f32 %v2290, %v2300
    %v2303 = vsub.f32 %v2291, %v2301
    %v2304 = vmul.f32 %v2302, %v2302
    %v2305 = vmul.f32 %v2303, %v2303
    %v2306 = vsel %vm136, %v2304, 0.0
    %2307 = vadd.xlane.f32.xlu0 %v2306
    %v2308 = vpop.xlane.xlu0 %2307
    %v2309 = vsel %vm136, %v2305, 0.0
    %2310 = vadd.xlane.f32.xlu0 %v2309
    %v2311 = vpop.xlane.xlu0 %2310
    %v2312 = vmul.f32 %v2308, %v2062
    %v2313 = vmul.f32 %v2311, %v2062
    %v2314 = vadd.f32 %v2312, 1e-05
    %v2315 = vadd.f32 %v2313, 1e-05
    %v2316 = vrsqrt.pop %v2314
    %v2317 = vrsqrt.pop %v2315
    %v2318 = vmul.f32 %v2302, %v2316
    %v2319 = vmul.f32 %v2303, %v2317
    %v2321 = vlaneseq
    %v2322 = vshrl.u32 %v2321, 7
    %v2323 = vsub.s32 0, %v2322
    %v2324 = vrot.slane %v2292, %v2323
    %v2326 = vmul.f32 %v2318, %v2324
    %v2327 = vmul.f32 %v2319, %v2324
    %v2329 = vlaneseq
    %v2330 = vshrl.u32 %v2329, 7
    %v2331 = vsub.s32 0, %v2330
    %v2332 = vrot.slane %v2293, %v2331
    %v2334 = vadd.f32 %v2326, %v2332
    %v2335 = vadd.f32 %v2327, %v2332
    %v2336 = vld [vmem:[%s18] sm:$0x1]
    %v2337 = vld [vmem:[%s19] sm:$0x1]
    %v2338 = vsel %vm136, %v2334, 0.0
    %2339 = vadd.xlane.f32.xlu0 %v2338
    %v2340 = vpop.xlane.xlu0 %2339
    %v2341 = vsel %vm136, %v2335, 0.0
    %2342 = vadd.xlane.f32.xlu0 %v2341
    %v2343 = vpop.xlane.xlu0 %2342
    %v2344 = vmul.f32 %v2340, %v2062
    %v2345 = vmul.f32 %v2343, %v2062
    %v2346 = vsub.f32 %v2334, %v2344
    %v2347 = vsub.f32 %v2335, %v2345
    %v2348 = vmul.f32 %v2346, %v2346
    %v2349 = vmul.f32 %v2347, %v2347
    %v2350 = vsel %vm136, %v2348, 0.0
    %2351 = vadd.xlane.f32.xlu0 %v2350
    %v2352 = vpop.xlane.xlu0 %2351
    %v2353 = vsel %vm136, %v2349, 0.0
    %2354 = vadd.xlane.f32.xlu0 %v2353
    %v2355 = vpop.xlane.xlu0 %2354
    %v2356 = vmul.f32 %v2352, %v2062
    %v2357 = vmul.f32 %v2355, %v2062
    %v2358 = vadd.f32 %v2356, 1e-05
    %v2359 = vadd.f32 %v2357, 1e-05
    %v2360 = vrsqrt.pop %v2358
    %v2361 = vrsqrt.pop %v2359
    %v2362 = vmul.f32 %v2346, %v2360
    %v2363 = vmul.f32 %v2347, %v2361
    %v2365 = vlaneseq
    %v2366 = vshrl.u32 %v2365, 7
    %v2367 = vsub.s32 0, %v2366
    %v2368 = vrot.slane %v2336, %v2367
    %v2370 = vmul.f32 %v2362, %v2368
    %v2371 = vmul.f32 %v2363, %v2368
    %v2373 = vlaneseq
    %v2374 = vshrl.u32 %v2373, 7
    %v2375 = vsub.s32 0, %v2374
    %v2376 = vrot.slane %v2337, %v2375
    %v2378 = vadd.f32 %v2370, %v2376
    %v2379 = vadd.f32 %v2371, %v2376
    %2380 = vst.msk [vmem:[#allocation10] sm:$0xff] %vm136, %v2378
    %2381 = vst.msk [vmem:[#allocation10 + $0x8] sm:$0xff] %vm136, %v2379
    // Predicated region
    $region98: #{tpu_custom_call.1} parent=1 // pred_check
      _
    $region99: #{tpu_custom_call.1} parent=1 // pred_check_branch
      %2383 = sbr.rel (0) target = $region101
    $region100: #{tpu_custom_call.1} parent=1 // pred_region
      %s2385 = ssub.s32 256, 256
      %2386 = vsyncadd [#allocation4], %s2385
      %s2387 = sshll.u32 [#allocation10], 4
      %s2388 = int_to_ptr.vmem [resolvable:$true] %s2387
      %2393 = dma.vmem_to_hbm [thread:$0]  %s2388, 256, %s20, [#allocation4], 128, 128, 8
    $region101: #{tpu_custom_call.1} parent=1 // pred_fallthru
      _
    // Predicated region
    $region102: #{tpu_custom_call.1} parent=1 // pred_check
      _
    $region103: #{tpu_custom_call.1} parent=1 // pred_check_branch
      %2395 = sbr.rel (0) target = $region105
    $region104: #{tpu_custom_call.1} parent=1 // pred_region
      %2396 = dma.done [#allocation4], 256
    $region105: #{tpu_custom_call.1} parent=1 // pred_fallthru
      _
    %2397 = vsyncpa [#allocation3], 1
    %2398 = vsyncpa [#allocation6], 1
    %2399 = vsyncpa [#allocation9], 1
    %2400 = vsyncpa [#allocation4], 1

</llo_original>
